<compile_context>
chip_gen: v6e
topology: v6e:2x2x1
jax: 0.10.0
libtpu: 0.0.40
codegen_flags: <defaults>
</compile_context>

<pallas_src>
import functools

import jax
import jax.numpy as jnp
from jax.experimental import pallas as pl
from jax.experimental.pallas import tpu as pltpu


def _block_kernel(B, T, C, n_heads, head_size, eps,
                  x_ref,        # (B, T, C)        f32
                  vecs_ref,     # (6, C)           f32: ln1_g, ln1_b, ln2_g, ln2_b, bp, b2
                  wkqv_ref,     # (C, 3*H*hs)      bf16
                  bkqv_ref,     # (1, 3*H*hs)      f32
                  wp_ref,       # (H, hs, C)       bf16
                  w1_ref,       # (C, 4C)          bf16
                  b1_ref,       # (1, 4C)          f32
                  w2_ref,       # (4C, C)          bf16
                  out_ref):     # (B, T, C)        f32
    BT = B * T
    HH = n_heads * head_size
    hs = head_size

    # Fold batch into the sublane axis (leading-dim merge only; layout-free since T % 8 == 0
    # for this config -- T=8 exactly fills one sublane group).
    x = x_ref[...].reshape(BT, C)                    # (BT, C) f32

    vecs = vecs_ref[...]                             # (6, C) -- one vreg
    ln1_g, ln1_b = vecs[0:1, :], vecs[1:2, :]
    ln2_g, ln2_b = vecs[2:3, :], vecs[3:4, :]
    bp, b2 = vecs[4:5, :], vecs[5:6, :]

    # ---- LayerNorm 1 (f32) ----
    mu = jnp.mean(x, axis=-1, keepdims=True)
    var = jnp.mean((x - mu) ** 2, axis=-1, keepdims=True)
    xn = (x - mu) * jax.lax.rsqrt(var + eps)
    xn = xn * ln1_g + ln1_b                          # (BT, C)

    # ---- Fused QKV projection: one full-width bf16 matmul, f32 accumulation ----
    kqv = jnp.dot(xn.astype(jnp.bfloat16), wkqv_ref[...],
                  preferred_element_type=jnp.float32) + bkqv_ref[...]    # (BT, 3*H*hs)
    kqv = kqv.reshape(B, T, 3 * HH)                  # split leading dim back out (layout-free)

    scale = float(C) ** -0.5

    # ---- Multi-head attention: per-head static loop, batched over B;
    #      output projection folded into the loop (no concatenate) ----
    attn = jnp.zeros((BT, C), jnp.float32)
    for h in range(n_heads):
        o = h * hs
        k = kqv[:, :, o:o + hs].astype(jnp.bfloat16)                     # (B, T, hs)
        q = kqv[:, :, HH + o:HH + o + hs].astype(jnp.bfloat16)           # (B, T, hs)
        v = kqv[:, :, 2 * HH + o:2 * HH + o + hs].astype(jnp.bfloat16)   # (B, T, hs)

        # Reference semantics: w = softmax((k @ q^T) * d_model^-0.5, dim=-1)
        s = jnp.einsum('btd,bsd->bts', k, q,
                       preferred_element_type=jnp.float32) * scale       # (B, T, T)
        s = s - jnp.max(s, axis=-1, keepdims=True)
        e = jnp.exp(s)
        p = e * pl.reciprocal(jnp.sum(e, axis=-1, keepdims=True), approx=True)

        ctx = jnp.einsum('bts,bsd->btd', p.astype(jnp.bfloat16), v,
                         preferred_element_type=jnp.float32)             # (B, T, hs)

        # Accumulate head contribution through its slice of the output projection.
        attn = attn + jnp.dot(ctx.reshape(BT, hs).astype(jnp.bfloat16), wp_ref[h],
                              preferred_element_type=jnp.float32)        # (BT, C)
    attn = attn + bp

    y = x + attn                                     # residual 1 (f32, exact)

    # ---- LayerNorm 2 ----
    mu2 = jnp.mean(y, axis=-1, keepdims=True)
    var2 = jnp.mean((y - mu2) ** 2, axis=-1, keepdims=True)
    yn = (y - mu2) * jax.lax.rsqrt(var2 + eps)
    yn = yn * ln2_g + ln2_b

    # ---- FeedForward: Linear(C,4C) -> ReLU -> Linear(4C,C), bf16 matmuls / f32 accum ----
    # TODO(synk): at large d_model, chunk the 4C hidden dim and accumulate ff per chunk
    #             to bound the live (BT, 4C) intermediate (important on v7x's 64 MiB VMEM).
    h1 = jnp.dot(yn.astype(jnp.bfloat16), w1_ref[...],
                 preferred_element_type=jnp.float32) + b1_ref[...]       # (BT, 4C)
    h1 = jnp.maximum(h1, 0.0)
    ff = jnp.dot(h1.astype(jnp.bfloat16), w2_ref[...],
                 preferred_element_type=jnp.float32) + b2                # (BT, C)

    out_ref[...] = (y + ff).reshape(B, T, C)


@functools.partial(jax.jit, static_argnames=("n_heads", "head_size", "d_model", "eps"))
def transformer_block(x, params, *, n_heads, head_size, d_model, eps=1e-5):
    B, T, C = x.shape
    assert C == d_model
    H, hs = n_heads, head_size
    f32, bf16 = jnp.float32, jnp.bfloat16

    # ---- host-side weight fusion / layout prep (one-time, fused under jit) ----
    def fuse(w):  # (H, C, hs) -> (C, H*hs), head-major columns
        return jnp.transpose(w, (1, 0, 2)).reshape(C, H * hs)

    w_kqv = jnp.concatenate(
        [fuse(params["wk"]), fuse(params["wq"]), fuse(params["wv"])], axis=-1
    ).astype(bf16)                                                   # (C, 3*H*hs)
    b_kqv = jnp.concatenate(
        [params["bk"].reshape(1, H * hs),
         params["bq"].reshape(1, H * hs),
         params["bv"].reshape(1, H * hs)], axis=-1).astype(f32)      # (1, 3*H*hs)
    wp_h = params["wp"].reshape(H, hs, C).astype(bf16)               # per-head proj slices
    w1 = params["w1"].astype(bf16)
    w2 = params["w2"].astype(bf16)
    # Pack all (1, C) vectors into one array -> fewer kernel inputs / DMA descriptors.
    vecs = jnp.concatenate(
        [params["ln1_g"], params["ln1_b"], params["ln2_g"], params["ln2_b"],
         params["bp"], params["b2"]], axis=0).astype(f32)            # (6, C)

    inputs = [x.astype(f32), vecs,
              w_kqv, b_kqv, wp_h,
              w1, params["b1"].astype(f32), w2]

    kernel = functools.partial(_block_kernel, B, T, C, H, hs, eps)

    # Tiny-shape regime: no grid (single invocation), everything resident in VMEM.
    # (At large B*T one would add a "parallel" grid axis over row tiles of 128-256 and
    #  single-buffer the constant-index weight BlockSpecs.)
    vmem = pl.BlockSpec(memory_space=pltpu.MemorySpace.VMEM)
    return pl.pallas_call(
        kernel,
        out_shape=jax.ShapeDtypeStruct((B, T, C), f32),
        in_specs=[vmem] * len(inputs),
        out_specs=vmem,
    )(*inputs)


# ---------------- pure-JAX reference (mirrors the PyTorch forward, f32) ----------------
def reference_block(x, p, *, n_heads, head_size, d_model, eps=1e-5):
    def ln(z, g, b):
        mu = jnp.mean(z, axis=-1, keepdims=True)
        var = jnp.mean((z - mu) ** 2, axis=-1, keepdims=True)
        return (z - mu) * jax.lax.rsqrt(var + eps) * g[0] + b[0]

    xn = ln(x, p["ln1_g"], p["ln1_b"])
    heads = []
    for h in range(n_heads):
        k = xn @ p["wk"][h] + p["bk"][h][0]
        q = xn @ p["wq"][h] + p["bq"][h][0]
        v = xn @ p["wv"][h] + p["bv"][h][0]
        w = jnp.einsum("bik,bjk->bij", k, q) * (d_model ** -0.5)
        w = jax.nn.softmax(w, axis=-1)
        heads.append(jnp.einsum("bij,bjd->bid", w, v))
    cat = jnp.concatenate(heads, axis=-1)
    attn = cat @ p["wp"] + p["bp"][0]
    y = x + attn
    yn = ln(y, p["ln2_g"], p["ln2_b"])
    ff = jnp.maximum(yn @ p["w1"] + p["b1"][0], 0.0) @ p["w2"] + p["b2"][0]
    return y + ff


def make_params(key, *, n_heads, head_size, d_model):
    ks = jax.random.split(key, 12)
    s = 0.05
    return {
        "ln1_g": jnp.ones((1, d_model), jnp.float32),
        "ln1_b": jnp.zeros((1, d_model), jnp.float32),
        "wk": s * jax.random.normal(ks[0], (n_heads, d_model, head_size), jnp.float32),
        "bk": s * jax.random.normal(ks[1], (n_heads, 1, head_size), jnp.float32),
        "wq": s * jax.random.normal(ks[2], (n_heads, d_model, head_size), jnp.float32),
        "bq": s * jax.random.normal(ks[3], (n_heads, 1, head_size), jnp.float32),
        "wv": s * jax.random.normal(ks[4], (n_heads, d_model, head_size), jnp.float32),
        "bv": s * jax.random.normal(ks[5], (n_heads, 1, head_size), jnp.float32),
        "wp": s * jax.random.normal(ks[6], (n_heads * head_size, d_model), jnp.float32),
        "bp": s * jax.random.normal(ks[7], (1, d_model), jnp.float32),
        "ln2_g": jnp.ones((1, d_model), jnp.float32),
        "ln2_b": jnp.zeros((1, d_model), jnp.float32),
        "w1": s * jax.random.normal(ks[8], (d_model, 4 * d_model), jnp.float32),
        "b1": s * jax.random.normal(ks[9], (1, 4 * d_model), jnp.float32),
        "w2": s * jax.random.normal(ks[10], (4 * d_model, d_model), jnp.float32),
        "b2": s * jax.random.normal(ks[11], (1, d_model), jnp.float32),
    }


if __name__ == "__main__":
    B, T, d_model = 2, 8, 32
    n_heads, head_size = 4, 8

    key = jax.random.PRNGKey(0)
    kx, kp = jax.random.split(key)
    x = jax.random.normal(kx, (B, T, d_model), jnp.float32)
    params = make_params(kp, n_heads=n_heads, head_size=head_size, d_model=d_model)

    out = transformer_block(x, params, n_heads=n_heads, head_size=head_size, d_model=d_model)
    out = jax.block_until_ready(out)

    ref = reference_block(x, params, n_heads=n_heads, head_size=head_size, d_model=d_model)
    assert out.shape == (B, T, d_model)
    # Tolerance accounts for bf16 matmul operands (f32 accumulate) + approx reciprocal.
    assert jnp.allclose(out, ref, atol=5e-2, rtol=5e-2), float(jnp.max(jnp.abs(out - ref)))

    print("KERNEL_OK")
</pallas_src>

<mosaic_0001>
module attributes {stable_mosaic.version = 11 : i64} {
  func.func @_block_kernel(%arg0: memref<2x8x32xf32, #tpu.memory_space<vmem>>, %arg1: memref<6x32xf32, #tpu.memory_space<vmem>>, %arg2: memref<32x96xbf16, #tpu.memory_space<vmem>>, %arg3: memref<1x96xf32, #tpu.memory_space<vmem>>, %arg4: memref<4x8x32xbf16, #tpu.memory_space<vmem>>, %arg5: memref<32x128xbf16, #tpu.memory_space<vmem>>, %arg6: memref<1x128xf32, #tpu.memory_space<vmem>>, %arg7: memref<128x32xbf16, #tpu.memory_space<vmem>>, %arg8: memref<2x8x32xf32, #tpu.memory_space<vmem>>) attributes {dimension_semantics = [], scalar_prefetch = 0 : i64, scratch_operands = 0 : i64, tpu.core_type = #tpu.core_type<tc>} {
    %c0 = arith.constant 0 : index
    %c0_0 = arith.constant 0 : index
    %c0_1 = arith.constant 0 : index
    %0 = vector.load %arg0[%c0, %c0_0, %c0_1] : memref<2x8x32xf32, #tpu.memory_space<vmem>>, vector<2x8x32xf32>
    %1 = vector.shape_cast %0 : vector<2x8x32xf32> to vector<16x32xf32>
    %c0_2 = arith.constant 0 : index
    %c0_3 = arith.constant 0 : index
    %2 = vector.load %arg1[%c0_2, %c0_3] : memref<6x32xf32, #tpu.memory_space<vmem>>, vector<6x32xf32>
    %3 = vector.extract_strided_slice %2 {offsets = [0, 0], sizes = [1, 32], strides = [1, 1]} : vector<6x32xf32> to vector<1x32xf32>
    %4 = vector.extract_strided_slice %2 {offsets = [1, 0], sizes = [1, 32], strides = [1, 1]} : vector<6x32xf32> to vector<1x32xf32>
    %5 = vector.extract_strided_slice %2 {offsets = [2, 0], sizes = [1, 32], strides = [1, 1]} : vector<6x32xf32> to vector<1x32xf32>
    %6 = vector.extract_strided_slice %2 {offsets = [3, 0], sizes = [1, 32], strides = [1, 1]} : vector<6x32xf32> to vector<1x32xf32>
    %7 = vector.extract_strided_slice %2 {offsets = [4, 0], sizes = [1, 32], strides = [1, 1]} : vector<6x32xf32> to vector<1x32xf32>
    %8 = vector.extract_strided_slice %2 {offsets = [5, 0], sizes = [1, 32], strides = [1, 1]} : vector<6x32xf32> to vector<1x32xf32>
    %cst = arith.constant dense<0.000000e+00> : vector<16xf32>
    %9 = vector.multi_reduction <add>, %1, %cst [1] : vector<16x32xf32> to vector<16xf32>
    %10 = vector.shape_cast %9 : vector<16xf32> to vector<16x1xf32>
    %cst_4 = arith.constant 3.200000e+01 : f32
    %11 = vector.broadcast %cst_4 : f32 to vector<16x1xf32>
    %12 = arith.divf %10, %11 : vector<16x1xf32>
    %13 = vector.broadcast %12 : vector<16x1xf32> to vector<16x32xf32>
    %14 = arith.subf %1, %13 : vector<16x32xf32>
    %15 = arith.mulf %14, %14 : vector<16x32xf32>
    %cst_5 = arith.constant dense<0.000000e+00> : vector<16xf32>
    %16 = vector.multi_reduction <add>, %15, %cst_5 [1] : vector<16x32xf32> to vector<16xf32>
    %17 = vector.shape_cast %16 : vector<16xf32> to vector<16x1xf32>
    %cst_6 = arith.constant 3.200000e+01 : f32
    %18 = vector.broadcast %cst_6 : f32 to vector<16x1xf32>
    %19 = arith.divf %17, %18 : vector<16x1xf32>
    %20 = vector.broadcast %12 : vector<16x1xf32> to vector<16x32xf32>
    %21 = arith.subf %1, %20 : vector<16x32xf32>
    %cst_7 = arith.constant 9.99999974E-6 : f32
    %22 = vector.broadcast %cst_7 : f32 to vector<16x1xf32>
    %23 = arith.addf %19, %22 : vector<16x1xf32>
    %24 = math.rsqrt %23 : vector<16x1xf32>
    %25 = vector.broadcast %24 : vector<16x1xf32> to vector<16x32xf32>
    %26 = arith.mulf %21, %25 : vector<16x32xf32>
    %27 = vector.broadcast %3 : vector<1x32xf32> to vector<16x32xf32>
    %28 = arith.mulf %26, %27 : vector<16x32xf32>
    %29 = vector.broadcast %4 : vector<1x32xf32> to vector<16x32xf32>
    %30 = arith.addf %28, %29 : vector<16x32xf32>
    %31 = arith.truncf %30 : vector<16x32xf32> to vector<16x32xbf16>
    %c0_8 = arith.constant 0 : index
    %c0_9 = arith.constant 0 : index
    %32 = vector.load %arg2[%c0_8, %c0_9] : memref<32x96xbf16, #tpu.memory_space<vmem>>, vector<32x96xbf16>
    %cst_10 = arith.constant dense<0.000000e+00> : vector<16x96xf32>
    %33 = tpu.matmul %31, %32, %cst_10 {dimension_numbers = #tpu.dot_dimension_numbers<[1], [0], [0], [1], [0, 0, 1, 1], [], []>} : vector<16x32xbf16>, vector<32x96xbf16>, vector<16x96xf32> -> vector<16x96xf32>
    %c0_11 = arith.constant 0 : index
    %c0_12 = arith.constant 0 : index
    %34 = vector.load %arg3[%c0_11, %c0_12] : memref<1x96xf32, #tpu.memory_space<vmem>>, vector<1x96xf32>
    %35 = vector.broadcast %34 : vector<1x96xf32> to vector<16x96xf32>
    %36 = arith.addf %33, %35 : vector<16x96xf32>
    %37 = vector.shape_cast %36 : vector<16x96xf32> to vector<2x8x96xf32>
    %cst_13 = arith.constant 0.000000e+00 : f32
    %38 = vector.broadcast %cst_13 : f32 to vector<16x32xf32>
    %39 = vector.extract_strided_slice %37 {offsets = [0, 0, 0], sizes = [2, 8, 8], strides = [1, 1, 1]} : vector<2x8x96xf32> to vector<2x8x8xf32>
    %40 = arith.truncf %39 : vector<2x8x8xf32> to vector<2x8x8xbf16>
    %41 = vector.extract_strided_slice %37 {offsets = [0, 0, 32], sizes = [2, 8, 8], strides = [1, 1, 1]} : vector<2x8x96xf32> to vector<2x8x8xf32>
    %42 = arith.truncf %41 : vector<2x8x8xf32> to vector<2x8x8xbf16>
    %43 = vector.extract_strided_slice %37 {offsets = [0, 0, 64], sizes = [2, 8, 8], strides = [1, 1, 1]} : vector<2x8x96xf32> to vector<2x8x8xf32>
    %44 = arith.truncf %43 : vector<2x8x8xf32> to vector<2x8x8xbf16>
    "tpu.trace_start"() <{level = 10 : i32, message = "btd,bsd->bts"}> : () -> ()
    %cst_14 = arith.constant dense<0.000000e+00> : vector<2x8x8xf32>
    %45 = tpu.matmul %40, %42, %cst_14 {dimension_numbers = #tpu.dot_dimension_numbers<[2], [2], [1], [1], [0, 0, 0, 1, 1, 1], [0], [0]>} : vector<2x8x8xbf16>, vector<2x8x8xbf16>, vector<2x8x8xf32> -> vector<2x8x8xf32>
    "tpu.trace_stop"() : () -> ()
    %cst_15 = arith.constant 0.176776692 : f32
    %46 = vector.broadcast %cst_15 : f32 to vector<2x8x8xf32>
    %47 = arith.mulf %45, %46 : vector<2x8x8xf32>
    %cst_16 = arith.constant dense<0xFF800000> : vector<2x8xf32>
    %48 = vector.multi_reduction <maximumf>, %47, %cst_16 [2] : vector<2x8x8xf32> to vector<2x8xf32>
    %49 = vector.shape_cast %48 : vector<2x8xf32> to vector<2x8x1xf32>
    %50 = vector.broadcast %49 : vector<2x8x1xf32> to vector<2x8x8xf32>
    %51 = arith.subf %47, %50 : vector<2x8x8xf32>
    %52 = math.exp %51 : vector<2x8x8xf32>
    %cst_17 = arith.constant dense<0.000000e+00> : vector<2x8xf32>
    %53 = vector.multi_reduction <add>, %52, %cst_17 [2] : vector<2x8x8xf32> to vector<2x8xf32>
    %54 = vector.shape_cast %53 : vector<2x8xf32> to vector<2x8x1xf32>
    %55 = tpu.reciprocal %54 {approx = true} : vector<2x8x1xf32> -> vector<2x8x1xf32>
    %56 = vector.broadcast %55 : vector<2x8x1xf32> to vector<2x8x8xf32>
    %57 = arith.mulf %52, %56 : vector<2x8x8xf32>
    %58 = arith.truncf %57 : vector<2x8x8xf32> to vector<2x8x8xbf16>
    "tpu.trace_start"() <{level = 10 : i32, message = "bts,bsd->btd"}> : () -> ()
    %cst_18 = arith.constant dense<0.000000e+00> : vector<2x8x8xf32>
    %59 = tpu.matmul %58, %44, %cst_18 {dimension_numbers = #tpu.dot_dimension_numbers<[2], [1], [1], [2], [0, 0, 0, 1, 1, 2], [0], [0]>} : vector<2x8x8xbf16>, vector<2x8x8xbf16>, vector<2x8x8xf32> -> vector<2x8x8xf32>
    "tpu.trace_stop"() : () -> ()
    %60 = vector.shape_cast %59 : vector<2x8x8xf32> to vector<16x8xf32>
    %61 = arith.truncf %60 : vector<16x8xf32> to vector<16x8xbf16>
    %c0_19 = arith.constant 0 : index
    %c0_20 = arith.constant 0 : index
    %c0_21 = arith.constant 0 : index
    %62 = vector.load %arg4[%c0_19, %c0_20, %c0_21] : memref<4x8x32xbf16, #tpu.memory_space<vmem>>, vector<1x8x32xbf16>
    %63 = vector.shape_cast %62 : vector<1x8x32xbf16> to vector<8x32xbf16>
    %cst_22 = arith.constant dense<0.000000e+00> : vector<16x32xf32>
    %64 = tpu.matmul %61, %63, %cst_22 {dimension_numbers = #tpu.dot_dimension_numbers<[1], [0], [0], [1], [0, 0, 1, 1], [], []>} : vector<16x8xbf16>, vector<8x32xbf16>, vector<16x32xf32> -> vector<16x32xf32>
    %65 = arith.addf %38, %64 : vector<16x32xf32>
    %66 = vector.extract_strided_slice %37 {offsets = [0, 0, 8], sizes = [2, 8, 8], strides = [1, 1, 1]} : vector<2x8x96xf32> to vector<2x8x8xf32>
    %67 = arith.truncf %66 : vector<2x8x8xf32> to vector<2x8x8xbf16>
    %68 = vector.extract_strided_slice %37 {offsets = [0, 0, 40], sizes = [2, 8, 8], strides = [1, 1, 1]} : vector<2x8x96xf32> to vector<2x8x8xf32>
    %69 = arith.truncf %68 : vector<2x8x8xf32> to vector<2x8x8xbf16>
    %70 = vector.extract_strided_slice %37 {offsets = [0, 0, 72], sizes = [2, 8, 8], strides = [1, 1, 1]} : vector<2x8x96xf32> to vector<2x8x8xf32>
    %71 = arith.truncf %70 : vector<2x8x8xf32> to vector<2x8x8xbf16>
    "tpu.trace_start"() <{level = 10 : i32, message = "btd,bsd->bts"}> : () -> ()
    %cst_23 = arith.constant dense<0.000000e+00> : vector<2x8x8xf32>
    %72 = tpu.matmul %67, %69, %cst_23 {dimension_numbers = #tpu.dot_dimension_numbers<[2], [2], [1], [1], [0, 0, 0, 1, 1, 1], [0], [0]>} : vector<2x8x8xbf16>, vector<2x8x8xbf16>, vector<2x8x8xf32> -> vector<2x8x8xf32>
    "tpu.trace_stop"() : () -> ()
    %cst_24 = arith.constant 0.176776692 : f32
    %73 = vector.broadcast %cst_24 : f32 to vector<2x8x8xf32>
    %74 = arith.mulf %72, %73 : vector<2x8x8xf32>
    %cst_25 = arith.constant dense<0xFF800000> : vector<2x8xf32>
    %75 = vector.multi_reduction <maximumf>, %74, %cst_25 [2] : vector<2x8x8xf32> to vector<2x8xf32>
    %76 = vector.shape_cast %75 : vector<2x8xf32> to vector<2x8x1xf32>
    %77 = vector.broadcast %76 : vector<2x8x1xf32> to vector<2x8x8xf32>
    %78 = arith.subf %74, %77 : vector<2x8x8xf32>
    %79 = math.exp %78 : vector<2x8x8xf32>
    %cst_26 = arith.constant dense<0.000000e+00> : vector<2x8xf32>
    %80 = vector.multi_reduction <add>, %79, %cst_26 [2] : vector<2x8x8xf32> to vector<2x8xf32>
    %81 = vector.shape_cast %80 : vector<2x8xf32> to vector<2x8x1xf32>
    %82 = tpu.reciprocal %81 {approx = true} : vector<2x8x1xf32> -> vector<2x8x1xf32>
    %83 = vector.broadcast %82 : vector<2x8x1xf32> to vector<2x8x8xf32>
    %84 = arith.mulf %79, %83 : vector<2x8x8xf32>
    %85 = arith.truncf %84 : vector<2x8x8xf32> to vector<2x8x8xbf16>
    "tpu.trace_start"() <{level = 10 : i32, message = "bts,bsd->btd"}> : () -> ()
    %cst_27 = arith.constant dense<0.000000e+00> : vector<2x8x8xf32>
    %86 = tpu.matmul %85, %71, %cst_27 {dimension_numbers = #tpu.dot_dimension_numbers<[2], [1], [1], [2], [0, 0, 0, 1, 1, 2], [0], [0]>} : vector<2x8x8xbf16>, vector<2x8x8xbf16>, vector<2x8x8xf32> -> vector<2x8x8xf32>
    "tpu.trace_stop"() : () -> ()
    %87 = vector.shape_cast %86 : vector<2x8x8xf32> to vector<16x8xf32>
    %88 = arith.truncf %87 : vector<16x8xf32> to vector<16x8xbf16>
    %c1 = arith.constant 1 : index
    %c0_28 = arith.constant 0 : index
    %c0_29 = arith.constant 0 : index
    %89 = vector.load %arg4[%c1, %c0_28, %c0_29] : memref<4x8x32xbf16, #tpu.memory_space<vmem>>, vector<1x8x32xbf16>
    %90 = vector.shape_cast %89 : vector<1x8x32xbf16> to vector<8x32xbf16>
    %cst_30 = arith.constant dense<0.000000e+00> : vector<16x32xf32>
    %91 = tpu.matmul %88, %90, %cst_30 {dimension_numbers = #tpu.dot_dimension_numbers<[1], [0], [0], [1], [0, 0, 1, 1], [], []>} : vector<16x8xbf16>, vector<8x32xbf16>, vector<16x32xf32> -> vector<16x32xf32>
    %92 = arith.addf %65, %91 : vector<16x32xf32>
    %93 = vector.extract_strided_slice %37 {offsets = [0, 0, 16], sizes = [2, 8, 8], strides = [1, 1, 1]} : vector<2x8x96xf32> to vector<2x8x8xf32>
    %94 = arith.truncf %93 : vector<2x8x8xf32> to vector<2x8x8xbf16>
    %95 = vector.extract_strided_slice %37 {offsets = [0, 0, 48], sizes = [2, 8, 8], strides = [1, 1, 1]} : vector<2x8x96xf32> to vector<2x8x8xf32>
    %96 = arith.truncf %95 : vector<2x8x8xf32> to vector<2x8x8xbf16>
    %97 = vector.extract_strided_slice %37 {offsets = [0, 0, 80], sizes = [2, 8, 8], strides = [1, 1, 1]} : vector<2x8x96xf32> to vector<2x8x8xf32>
    %98 = arith.truncf %97 : vector<2x8x8xf32> to vector<2x8x8xbf16>
    "tpu.trace_start"() <{level = 10 : i32, message = "btd,bsd->bts"}> : () -> ()
    %cst_31 = arith.constant dense<0.000000e+00> : vector<2x8x8xf32>
    %99 = tpu.matmul %94, %96, %cst_31 {dimension_numbers = #tpu.dot_dimension_numbers<[2], [2], [1], [1], [0, 0, 0, 1, 1, 1], [0], [0]>} : vector<2x8x8xbf16>, vector<2x8x8xbf16>, vector<2x8x8xf32> -> vector<2x8x8xf32>
    "tpu.trace_stop"() : () -> ()
    %cst_32 = arith.constant 0.176776692 : f32
    %100 = vector.broadcast %cst_32 : f32 to vector<2x8x8xf32>
    %101 = arith.mulf %99, %100 : vector<2x8x8xf32>
    %cst_33 = arith.constant dense<0xFF800000> : vector<2x8xf32>
    %102 = vector.multi_reduction <maximumf>, %101, %cst_33 [2] : vector<2x8x8xf32> to vector<2x8xf32>
    %103 = vector.shape_cast %102 : vector<2x8xf32> to vector<2x8x1xf32>
    %104 = vector.broadcast %103 : vector<2x8x1xf32> to vector<2x8x8xf32>
    %105 = arith.subf %101, %104 : vector<2x8x8xf32>
    %106 = math.exp %105 : vector<2x8x8xf32>
    %cst_34 = arith.constant dense<0.000000e+00> : vector<2x8xf32>
    %107 = vector.multi_reduction <add>, %106, %cst_34 [2] : vector<2x8x8xf32> to vector<2x8xf32>
    %108 = vector.shape_cast %107 : vector<2x8xf32> to vector<2x8x1xf32>
    %109 = tpu.reciprocal %108 {approx = true} : vector<2x8x1xf32> -> vector<2x8x1xf32>
    %110 = vector.broadcast %109 : vector<2x8x1xf32> to vector<2x8x8xf32>
    %111 = arith.mulf %106, %110 : vector<2x8x8xf32>
    %112 = arith.truncf %111 : vector<2x8x8xf32> to vector<2x8x8xbf16>
    "tpu.trace_start"() <{level = 10 : i32, message = "bts,bsd->btd"}> : () -> ()
    %cst_35 = arith.constant dense<0.000000e+00> : vector<2x8x8xf32>
    %113 = tpu.matmul %112, %98, %cst_35 {dimension_numbers = #tpu.dot_dimension_numbers<[2], [1], [1], [2], [0, 0, 0, 1, 1, 2], [0], [0]>} : vector<2x8x8xbf16>, vector<2x8x8xbf16>, vector<2x8x8xf32> -> vector<2x8x8xf32>
    "tpu.trace_stop"() : () -> ()
    %114 = vector.shape_cast %113 : vector<2x8x8xf32> to vector<16x8xf32>
    %115 = arith.truncf %114 : vector<16x8xf32> to vector<16x8xbf16>
    %c2 = arith.constant 2 : index
    %c0_36 = arith.constant 0 : index
    %c0_37 = arith.constant 0 : index
    %116 = vector.load %arg4[%c2, %c0_36, %c0_37] : memref<4x8x32xbf16, #tpu.memory_space<vmem>>, vector<1x8x32xbf16>
    %117 = vector.shape_cast %116 : vector<1x8x32xbf16> to vector<8x32xbf16>
    %cst_38 = arith.constant dense<0.000000e+00> : vector<16x32xf32>
    %118 = tpu.matmul %115, %117, %cst_38 {dimension_numbers = #tpu.dot_dimension_numbers<[1], [0], [0], [1], [0, 0, 1, 1], [], []>} : vector<16x8xbf16>, vector<8x32xbf16>, vector<16x32xf32> -> vector<16x32xf32>
    %119 = arith.addf %92, %118 : vector<16x32xf32>
    %120 = vector.extract_strided_slice %37 {offsets = [0, 0, 24], sizes = [2, 8, 8], strides = [1, 1, 1]} : vector<2x8x96xf32> to vector<2x8x8xf32>
    %121 = arith.truncf %120 : vector<2x8x8xf32> to vector<2x8x8xbf16>
    %122 = vector.extract_strided_slice %37 {offsets = [0, 0, 56], sizes = [2, 8, 8], strides = [1, 1, 1]} : vector<2x8x96xf32> to vector<2x8x8xf32>
    %123 = arith.truncf %122 : vector<2x8x8xf32> to vector<2x8x8xbf16>
    %124 = vector.extract_strided_slice %37 {offsets = [0, 0, 88], sizes = [2, 8, 8], strides = [1, 1, 1]} : vector<2x8x96xf32> to vector<2x8x8xf32>
    %125 = arith.truncf %124 : vector<2x8x8xf32> to vector<2x8x8xbf16>
    "tpu.trace_start"() <{level = 10 : i32, message = "btd,bsd->bts"}> : () -> ()
    %cst_39 = arith.constant dense<0.000000e+00> : vector<2x8x8xf32>
    %126 = tpu.matmul %121, %123, %cst_39 {dimension_numbers = #tpu.dot_dimension_numbers<[2], [2], [1], [1], [0, 0, 0, 1, 1, 1], [0], [0]>} : vector<2x8x8xbf16>, vector<2x8x8xbf16>, vector<2x8x8xf32> -> vector<2x8x8xf32>
    "tpu.trace_stop"() : () -> ()
    %cst_40 = arith.constant 0.176776692 : f32
    %127 = vector.broadcast %cst_40 : f32 to vector<2x8x8xf32>
    %128 = arith.mulf %126, %127 : vector<2x8x8xf32>
    %cst_41 = arith.constant dense<0xFF800000> : vector<2x8xf32>
    %129 = vector.multi_reduction <maximumf>, %128, %cst_41 [2] : vector<2x8x8xf32> to vector<2x8xf32>
    %130 = vector.shape_cast %129 : vector<2x8xf32> to vector<2x8x1xf32>
    %131 = vector.broadcast %130 : vector<2x8x1xf32> to vector<2x8x8xf32>
    %132 = arith.subf %128, %131 : vector<2x8x8xf32>
    %133 = math.exp %132 : vector<2x8x8xf32>
    %cst_42 = arith.constant dense<0.000000e+00> : vector<2x8xf32>
    %134 = vector.multi_reduction <add>, %133, %cst_42 [2] : vector<2x8x8xf32> to vector<2x8xf32>
    %135 = vector.shape_cast %134 : vector<2x8xf32> to vector<2x8x1xf32>
    %136 = tpu.reciprocal %135 {approx = true} : vector<2x8x1xf32> -> vector<2x8x1xf32>
    %137 = vector.broadcast %136 : vector<2x8x1xf32> to vector<2x8x8xf32>
    %138 = arith.mulf %133, %137 : vector<2x8x8xf32>
    %139 = arith.truncf %138 : vector<2x8x8xf32> to vector<2x8x8xbf16>
    "tpu.trace_start"() <{level = 10 : i32, message = "bts,bsd->btd"}> : () -> ()
    %cst_43 = arith.constant dense<0.000000e+00> : vector<2x8x8xf32>
    %140 = tpu.matmul %139, %125, %cst_43 {dimension_numbers = #tpu.dot_dimension_numbers<[2], [1], [1], [2], [0, 0, 0, 1, 1, 2], [0], [0]>} : vector<2x8x8xbf16>, vector<2x8x8xbf16>, vector<2x8x8xf32> -> vector<2x8x8xf32>
    "tpu.trace_stop"() : () -> ()
    %141 = vector.shape_cast %140 : vector<2x8x8xf32> to vector<16x8xf32>
    %142 = arith.truncf %141 : vector<16x8xf32> to vector<16x8xbf16>
    %c3 = arith.constant 3 : index
    %c0_44 = arith.constant 0 : index
    %c0_45 = arith.constant 0 : index
    %143 = vector.load %arg4[%c3, %c0_44, %c0_45] : memref<4x8x32xbf16, #tpu.memory_space<vmem>>, vector<1x8x32xbf16>
    %144 = vector.shape_cast %143 : vector<1x8x32xbf16> to vector<8x32xbf16>
    %cst_46 = arith.constant dense<0.000000e+00> : vector<16x32xf32>
    %145 = tpu.matmul %142, %144, %cst_46 {dimension_numbers = #tpu.dot_dimension_numbers<[1], [0], [0], [1], [0, 0, 1, 1], [], []>} : vector<16x8xbf16>, vector<8x32xbf16>, vector<16x32xf32> -> vector<16x32xf32>
    %146 = arith.addf %119, %145 : vector<16x32xf32>
    %147 = vector.broadcast %7 : vector<1x32xf32> to vector<16x32xf32>
    %148 = arith.addf %146, %147 : vector<16x32xf32>
    %149 = arith.addf %1, %148 : vector<16x32xf32>
    %cst_47 = arith.constant dense<0.000000e+00> : vector<16xf32>
    %150 = vector.multi_reduction <add>, %149, %cst_47 [1] : vector<16x32xf32> to vector<16xf32>
    %151 = vector.shape_cast %150 : vector<16xf32> to vector<16x1xf32>
    %cst_48 = arith.constant 3.200000e+01 : f32
    %152 = vector.broadcast %cst_48 : f32 to vector<16x1xf32>
    %153 = arith.divf %151, %152 : vector<16x1xf32>
    %154 = vector.broadcast %153 : vector<16x1xf32> to vector<16x32xf32>
    %155 = arith.subf %149, %154 : vector<16x32xf32>
    %156 = arith.mulf %155, %155 : vector<16x32xf32>
    %cst_49 = arith.constant dense<0.000000e+00> : vector<16xf32>
    %157 = vector.multi_reduction <add>, %156, %cst_49 [1] : vector<16x32xf32> to vector<16xf32>
    %158 = vector.shape_cast %157 : vector<16xf32> to vector<16x1xf32>
    %cst_50 = arith.constant 3.200000e+01 : f32
    %159 = vector.broadcast %cst_50 : f32 to vector<16x1xf32>
    %160 = arith.divf %158, %159 : vector<16x1xf32>
    %161 = vector.broadcast %153 : vector<16x1xf32> to vector<16x32xf32>
    %162 = arith.subf %149, %161 : vector<16x32xf32>
    %cst_51 = arith.constant 9.99999974E-6 : f32
    %163 = vector.broadcast %cst_51 : f32 to vector<16x1xf32>
    %164 = arith.addf %160, %163 : vector<16x1xf32>
    %165 = math.rsqrt %164 : vector<16x1xf32>
    %166 = vector.broadcast %165 : vector<16x1xf32> to vector<16x32xf32>
    %167 = arith.mulf %162, %166 : vector<16x32xf32>
    %168 = vector.broadcast %5 : vector<1x32xf32> to vector<16x32xf32>
    %169 = arith.mulf %167, %168 : vector<16x32xf32>
    %170 = vector.broadcast %6 : vector<1x32xf32> to vector<16x32xf32>
    %171 = arith.addf %169, %170 : vector<16x32xf32>
    %172 = arith.truncf %171 : vector<16x32xf32> to vector<16x32xbf16>
    %c0_52 = arith.constant 0 : index
    %c0_53 = arith.constant 0 : index
    %173 = vector.load %arg5[%c0_52, %c0_53] : memref<32x128xbf16, #tpu.memory_space<vmem>>, vector<32x128xbf16>
    %cst_54 = arith.constant dense<0.000000e+00> : vector<16x128xf32>
    %174 = tpu.matmul %172, %173, %cst_54 {dimension_numbers = #tpu.dot_dimension_numbers<[1], [0], [0], [1], [0, 0, 1, 1], [], []>} : vector<16x32xbf16>, vector<32x128xbf16>, vector<16x128xf32> -> vector<16x128xf32>
    %c0_55 = arith.constant 0 : index
    %c0_56 = arith.constant 0 : index
    %175 = vector.load %arg6[%c0_55, %c0_56] : memref<1x128xf32, #tpu.memory_space<vmem>>, vector<1x128xf32>
    %176 = vector.broadcast %175 : vector<1x128xf32> to vector<16x128xf32>
    %177 = arith.addf %174, %176 : vector<16x128xf32>
    %cst_57 = arith.constant 0.000000e+00 : f32
    %178 = vector.broadcast %cst_57 : f32 to vector<16x128xf32>
    %179 = arith.maximumf %177, %178 : vector<16x128xf32>
    %180 = arith.truncf %179 : vector<16x128xf32> to vector<16x128xbf16>
    %c0_58 = arith.constant 0 : index
    %c0_59 = arith.constant 0 : index
    %181 = vector.load %arg7[%c0_58, %c0_59] : memref<128x32xbf16, #tpu.memory_space<vmem>>, vector<128x32xbf16>
    %cst_60 = arith.constant dense<0.000000e+00> : vector<16x32xf32>
    %182 = tpu.matmul %180, %181, %cst_60 {dimension_numbers = #tpu.dot_dimension_numbers<[1], [0], [0], [1], [0, 0, 1, 1], [], []>} : vector<16x128xbf16>, vector<128x32xbf16>, vector<16x32xf32> -> vector<16x32xf32>
    %183 = vector.broadcast %8 : vector<1x32xf32> to vector<16x32xf32>
    %184 = arith.addf %182, %183 : vector<16x32xf32>
    %185 = arith.addf %149, %184 : vector<16x32xf32>
    %186 = vector.shape_cast %185 : vector<16x32xf32> to vector<2x8x32xf32>
    %c0_61 = arith.constant 0 : index
    %c0_62 = arith.constant 0 : index
    %c0_63 = arith.constant 0 : index
    %187 = vector.load %arg8[%c0_61, %c0_62, %c0_63] : memref<2x8x32xf32, #tpu.memory_space<vmem>>, vector<2x8x32xf32>
    tpu.vector_store %arg8[%c0_61, %c0_62, %c0_63], %186 {strides = array<i32>} : memref<2x8x32xf32, #tpu.memory_space<vmem>>, vector<2x8x32xf32>,
    return
  }
}

</mosaic_0001>

<llo_original>
// kernel: transformer_block.1
$region0: #{transformer_block.1}
  #allocation0 [shape = 'u32[]', space=smem, size = 0x4, offset = 0x4, fixed_abs, tag = 'smem constant byte address 0x4 - core index']
  #allocation1 [shape = 'u32[144,128]{1,0:T(1,128)}', space=vmem, size = 0x12000, scoped, tag = 'internal scratch']
  %s0 = inlined_call_operand.vmem [shape: f32[2,8,32], index: 0, kind: input, shape index: {}]
  %s1 = inlined_call_operand.vmem [shape: f32[6,32], index: 1, kind: input, shape index: {}]
  %s2 = inlined_call_operand.vmem [shape: bf16[32,96], index: 2, kind: input, shape index: {}]
  %s3 = inlined_call_operand.vmem [shape: f32[1,96], index: 3, kind: input, shape index: {}]
  %s4 = inlined_call_operand.vmem [shape: bf16[4,8,32], index: 4, kind: input, shape index: {}]
  %s5 = inlined_call_operand.vmem [shape: bf16[32,128], index: 5, kind: input, shape index: {}]
  %s6 = inlined_call_operand.vmem [shape: f32[1,128], index: 6, kind: input, shape index: {}]
  %s7 = inlined_call_operand.vmem [shape: bf16[128,32], index: 7, kind: input, shape index: {}]
  %s8 = inlined_call_operand.hbm [shape: f32[2,8,32], index: 8, kind: output, shape index: {}]
  %s9 = sld [smem:[#allocation0]]
  $region42: #{transformer_block.1} parent=0
    _
  %s11 = ssub.s32 1, %s9
  %s12 = scalar_select 0, %s11, %s9
  $region1: #{transformer_block.1} parent=0
    #allocation2 [shape = 'u8[8192]{0}', space=vmem, size = 0x2000, scoped, tag = 'output window, operand 0, single buffered']
    #allocation3 [shape = 's32[1]{0}', space=sflag, size = 0x4, scoped, tag = 'scoped memory for transformer_block.1']
    %13 = vsyncpa [#allocation3], 0
    // Predicated region
    $region2: #{transformer_block.1} parent=1 // pred_check
      _
    $region3: #{transformer_block.1} parent=1 // pred_check_branch
      %15 = sbr.rel (0) target = $region5
    $region4: #{transformer_block.1} parent=1 // pred_region
      _
    $region5: #{transformer_block.1} parent=1 // pred_fallthru
      _
    // Predicated region
    $region6: #{transformer_block.1} parent=1 // pred_check
      _
    $region7: #{transformer_block.1} parent=1 // pred_check_branch
      %17 = sbr.rel (0) target = $region9
    $region8: #{transformer_block.1} parent=1 // pred_region
      _
    $region9: #{transformer_block.1} parent=1 // pred_fallthru
      _
    // Predicated region
    $region10: #{transformer_block.1} parent=1 // pred_check
      _
    $region11: #{transformer_block.1} parent=1 // pred_check_branch
      %19 = sbr.rel (0) target = $region13
    $region12: #{transformer_block.1} parent=1 // pred_region
      _
    $region13: #{transformer_block.1} parent=1 // pred_fallthru
      _
    // Predicated region
    $region14: #{transformer_block.1} parent=1 // pred_check
      _
    $region15: #{transformer_block.1} parent=1 // pred_check_branch
      %21 = sbr.rel (0) target = $region17
    $region16: #{transformer_block.1} parent=1 // pred_region
      _
    $region17: #{transformer_block.1} parent=1 // pred_fallthru
      _
    // Predicated region
    $region18: #{transformer_block.1} parent=1 // pred_check
      _
    $region19: #{transformer_block.1} parent=1 // pred_check_branch
      %23 = sbr.rel (0) target = $region21
    $region20: #{transformer_block.1} parent=1 // pred_region
      _
    $region21: #{transformer_block.1} parent=1 // pred_fallthru
      _
    // Predicated region
    $region22: #{transformer_block.1} parent=1 // pred_check
      _
    $region23: #{transformer_block.1} parent=1 // pred_check_branch
      %25 = sbr.rel (0) target = $region25
    $region24: #{transformer_block.1} parent=1 // pred_region
      _
    $region25: #{transformer_block.1} parent=1 // pred_fallthru
      _
    // Predicated region
    $region26: #{transformer_block.1} parent=1 // pred_check
      _
    $region27: #{transformer_block.1} parent=1 // pred_check_branch
      %27 = sbr.rel (0) target = $region29
    $region28: #{transformer_block.1} parent=1 // pred_region
      _
    $region29: #{transformer_block.1} parent=1 // pred_fallthru
      _
    // Predicated region
    $region30: #{transformer_block.1} parent=1 // pred_check
      _
    $region31: #{transformer_block.1} parent=1 // pred_check_branch
      %29 = sbr.rel (0) target = $region33
    $region32: #{transformer_block.1} parent=1 // pred_region
      _
    $region33: #{transformer_block.1} parent=1 // pred_fallthru
      _
    %v31 = vld [vmem:[%s0] sm:$0xff]
    %v32 = vld [vmem:[%s0 + $0x8] sm:$0xff]
    %v33 = vld [vmem:[%s1] sm:$0x3f]
    %vm34 = vcmask 261120
    %v35 = vsel %vm34, %v31, 0.0
    %36 = vadd.xlane.f32.xlu0 %v35
    %v37 = vpop.xlane.xlu0 %36
    %v38 = vsel %vm34, %v32, 0.0
    %39 = vadd.xlane.f32.xlu0 %v38
    %v40 = vpop.xlane.xlu0 %39
    %v41 = vrcp.pop 32.0
    %v42 = vmul.f32 %v37, %v41
    %v43 = vmul.f32 %v40, %v41
    %v44 = vsub.f32 %v31, %v42
    %v45 = vsub.f32 %v32, %v43
    %v46 = vmul.f32 %v44, %v44
    %v47 = vmul.f32 %v45, %v45
    %v48 = vsel %vm34, %v46, 0.0
    %49 = vadd.xlane.f32.xlu0 %v48
    %v50 = vpop.xlane.xlu0 %49
    %v51 = vsel %vm34, %v47, 0.0
    %52 = vadd.xlane.f32.xlu0 %v51
    %v53 = vpop.xlane.xlu0 %52
    %v54 = vmul.f32 %v50, %v41
    %v55 = vmul.f32 %v53, %v41
    %v56 = vadd.f32 %v54, 1e-05
    %v57 = vadd.f32 %v55, 1e-05
    %v58 = vrsqrt.pop %v56
    %v59 = vrsqrt.pop %v57
    %v60 = vmul.f32 %v44, %v58
    %v61 = vmul.f32 %v45, %v59
    %v62 = vlaneseq
    %v63 = vshrl.u32 %v62, 7
    %v64 = vsub.s32 0, %v63
    %v65 = vrot.slane %v33, %v64
    %v66 = vmul.f32 %v60, %v65
    %v67 = vmul.f32 %v61, %v65
    %v68 = vlaneseq
    %v69 = vshrl.u32 %v68, 7
    %v70 = vsub.s32 1, %v69
    %v71 = vrot.slane %v33, %v70
    %v72 = vadd.f32 %v66, %v71
    %v73 = vadd.f32 %v67, %v71
    %v74 = vpack.c.bf16 %v73, %v72
    %v75 = vld [vmem:[%s2] sm:$0xf]
    %v76 = vld [vmem:[%s2 + $0x4] sm:$0xf]
    %v77 = vld [vmem:[%s2 + $0x8] sm:$0xf]
    %v78 = vld [vmem:[%s2 + $0xc] sm:$0xf]
    %v79 = vld [vmem:[%s3] sm:$0x1]
    %v81 = vlaneseq
    %v82 = vshrl.u32 %v81, 7
    %v83 = vsub.s32 0, %v82
    %v84 = vrot.slane %v79, %v83
    %v90 = vunpack.c.l.b16 %v75
    %v91 = vunpack.c.l.b16 %v76
    %v92 = vunpack.c.l.b16 %v77
    %v93 = vunpack.c.l.b16 %v78
    %v94 = vpack.c.b16 %v91, %v90
    %v95 = vpack.c.b16 %v93, %v92
    %v99 = vsel %vm34, %v74, 0
    %101 = vmatprep.subr.bf16.mxu0 0
    %102 = vmatpush1.bf16.msra.mxu0 0
    %103 = vmatprep.subr.bf16.mxu0 0
    %104 = vmatpush1.bf16.msra.mxu0 0
    %105 = vmatprep.subr.bf16.mxu0 0
    %106 = vmatpush1.bf16.msra.mxu0 0
    %107 = vmatprep.subr.bf16.mxu0 0
    %108 = vmatpush1.bf16.msra.mxu0 0
    %109 = vmatprep.subr.bf16.mxu0 0
    %110 = vmatpush1.bf16.msra.mxu0 0
    %111 = vmatprep.subr.bf16.mxu0 0
    %112 = vmatpush1.bf16.msra.mxu0 0
    %113 = vmatprep.subr.bf16.mxu0 0
    %114 = vmatpush1.bf16.msra.mxu0 %v95
    %115 = vmatprep.subr.bf16.mxu0 0
    %116 = vmatpush1.bf16.msra.mxu0 %v94
    %117 = vmatprep.subr.bf16.mxu0 0
    %118 = vmatpush2.bf16.msra.mxu0 0
    %119 = vmatprep.subr.bf16.mxu0 0
    %120 = vmatpush2.bf16.msra.mxu0 0
    %121 = vmatprep.subr.bf16.mxu0 0
    %122 = vmatpush2.bf16.msra.mxu0 0
    %123 = vmatprep.subr.bf16.mxu0 0
    %124 = vmatpush2.bf16.msra.mxu0 0
    %125 = vmatprep.subr.bf16.mxu0 0
    %126 = vmatpush2.bf16.msra.mxu0 0
    %127 = vmatprep.subr.bf16.mxu0 0
    %128 = vmatpush2.bf16.msra.mxu0 0
    %129 = vmatprep.subr.bf16.mxu0 0
    %130 = vmatpush2.bf16.msra.mxu0 0
    %131 = vmatprep.subr.bf16.mxu0 0
    %132 = vmatpush2.bf16.msra.mxu0 0
    %133 = vmatprep.mubr.bf16.mxu0 0
    %134 = vmatmul.mubr.bf16.gmra.mxu0 %v99
    %v135 = vpop.f32.mrf.mxu0
    %v136 = vadd.f32 %v84, %v135
    %v137 = vpop.f32.mrf.mxu0
    %v138 = vpop.f32.mrf.mxu0
    %v139 = vadd.f32 %v84, %v138
    %v140 = vpop.f32.mrf.mxu0
    %141 = vdwg.mxu0
    %v142 = vpack.c.bf16 %v136, %v136
    %v143 = vpack.c.bf16 %v139, %v139
    %145 = vrot.lane.b32.xlu0 %v142, 96
    %v146 = vpop.permute.xlu0 %145
    %vm147 = vcmask 64512
    %v149 = vsel %vm147, %v142, 0
    %v152 = vsel %vm147, %v146, 0
    %154 = vmatprep.subr.bf16.mxu0 0
    %155 = vmatpush1.bf16.xpose.msra.mxu0 0
    %156 = vmatprep.subr.bf16.mxu0 0
    %157 = vmatpush1.bf16.xpose.msra.mxu0 0
    %158 = vmatprep.subr.bf16.mxu0 0
    %159 = vmatpush1.bf16.xpose.msra.mxu0 0
    %160 = vmatprep.subr.bf16.mxu0 0
    %161 = vmatpush1.bf16.xpose.msra.mxu0 0
    %162 = vmatprep.subr.bf16.mxu0 0
    %163 = vmatpush1.bf16.xpose.msra.mxu0 0
    %164 = vmatprep.subr.bf16.mxu0 0
    %165 = vmatpush1.bf16.xpose.msra.mxu0 0
    %166 = vmatprep.subr.bf16.mxu0 0
    %167 = vmatpush1.bf16.xpose.msra.mxu0 0
    %168 = vmatprep.subr.bf16.mxu0 0
    %169 = vmatpush1.bf16.xpose.msra.mxu0 %v152
    %170 = vmatprep.subr.bf16.mxu0 0
    %171 = vmatpush2.bf16.xpose.msra.mxu0 0
    %172 = vmatprep.subr.bf16.mxu0 0
    %173 = vmatpush2.bf16.xpose.msra.mxu0 0
    %174 = vmatprep.subr.bf16.mxu0 0
    %175 = vmatpush2.bf16.xpose.msra.mxu0 0
    %176 = vmatprep.subr.bf16.mxu0 0
    %177 = vmatpush2.bf16.xpose.msra.mxu0 0
    %178 = vmatprep.subr.bf16.mxu0 0
    %179 = vmatpush2.bf16.xpose.msra.mxu0 0
    %180 = vmatprep.subr.bf16.mxu0 0
    %181 = vmatpush2.bf16.xpose.msra.mxu0 0
    %182 = vmatprep.subr.bf16.mxu0 0
    %183 = vmatpush2.bf16.xpose.msra.mxu0 0
    %184 = vmatprep.subr.bf16.mxu0 0
    %185 = vmatpush2.bf16.xpose.msra.mxu0 0
    %186 = vmatprep.mubr.bf16.mxu0 0
    %187 = vmatmul.mubr.bf16.gmra.mxu0 %v149
    %v188 = vpop.f32.mrf.mxu0
    %v189 = vadd.f32 0.0, %v188
    %v190 = vpop.f32.mrf.mxu0
    %v191 = vpop.f32.mrf.mxu0
    %v192 = vpop.f32.mrf.mxu0
    %193 = vdwg.mxu0
    %195 = vrot.lane.b32.xlu0 %v143, 96
    %v196 = vpop.permute.xlu0 %195
    %v198 = vsel %vm147, %v143, 0
    %v201 = vsel %vm147, %v196, 0
    %203 = vmatprep.subr.bf16.mxu0 0
    %204 = vmatpush1.bf16.xpose.msra.mxu0 0
    %205 = vmatprep.subr.bf16.mxu0 0
    %206 = vmatpush1.bf16.xpose.msra.mxu0 0
    %207 = vmatprep.subr.bf16.mxu0 0
    %208 = vmatpush1.bf16.xpose.msra.mxu0 0
    %209 = vmatprep.subr.bf16.mxu0 0
    %210 = vmatpush1.bf16.xpose.msra.mxu0 0
    %211 = vmatprep.subr.bf16.mxu0 0
    %212 = vmatpush1.bf16.xpose.msra.mxu0 0
    %213 = vmatprep.subr.bf16.mxu0 0
    %214 = vmatpush1.bf16.xpose.msra.mxu0 0
    %215 = vmatprep.subr.bf16.mxu0 0
    %216 = vmatpush1.bf16.xpose.msra.mxu0 0
    %217 = vmatprep.subr.bf16.mxu0 0
    %218 = vmatpush1.bf16.xpose.msra.mxu0 %v201
    %219 = vmatprep.subr.bf16.mxu0 0
    %220 = vmatpush2.bf16.xpose.msra.mxu0 0
    %221 = vmatprep.subr.bf16.mxu0 0
    %222 = vmatpush2.bf16.xpose.msra.mxu0 0
    %223 = vmatprep.subr.bf16.mxu0 0
    %224 = vmatpush2.bf16.xpose.msra.mxu0 0
    %225 = vmatprep.subr.bf16.mxu0 0
    %226 = vmatpush2.bf16.xpose.msra.mxu0 0
    %227 = vmatprep.subr.bf16.mxu0 0
    %228 = vmatpush2.bf16.xpose.msra.mxu0 0
    %229 = vmatprep.subr.bf16.mxu0 0
    %230 = vmatpush2.bf16.xpose.msra.mxu0 0
    %231 = vmatprep.subr.bf16.mxu0 0
    %232 = vmatpush2.bf16.xpose.msra.mxu0 0
    %233 = vmatprep.subr.bf16.mxu0 0
    %234 = vmatpush2.bf16.xpose.msra.mxu0 0
    %235 = vmatprep.mubr.bf16.mxu0 0
    %236 = vmatmul.mubr.bf16.gmra.mxu0 %v198
    %v237 = vpop.f32.mrf.mxu0
    %v238 = vadd.f32 0.0, %v237
    %v239 = vpop.f32.mrf.mxu0
    %v240 = vpop.f32.mrf.mxu0
    %v241 = vpop.f32.mrf.mxu0
    %242 = vdwg.mxu0
    %v243 = vmul.f32 %v189, 0.17677669
    %v244 = vmul.f32 %v238, 0.17677669
    %v245 = vsel %vm147, %v243, -inf
    %246 = vmax.xlane.f32.xlu0 %v245
    %v247 = vpop.xlane.xlu0 %246
    %v248 = vsel %vm147, %v244, -inf
    %249 = vmax.xlane.f32.xlu0 %v248
    %v250 = vpop.xlane.xlu0 %249
    %v251 = vsub.f32 %v243, %v247
    %v252 = vsub.f32 %v244, %v250
    %v253 = vmul.f32 %v251, 1.442695
    %v254 = vpow.pop %v253
    %v255 = vmul.f32 %v252, 1.442695
    %v256 = vpow.pop %v255
    %v257 = vsel %vm147, %v254, 0.0
    %258 = vadd.xlane.f32.xlu0 %v257
    %v259 = vpop.xlane.xlu0 %258
    %v260 = vsel %vm147, %v256, 0.0
    %261 = vadd.xlane.f32.xlu0 %v260
    %v262 = vpop.xlane.xlu0 %261
    %v263 = vrcp.pop %v259
    %v264 = vrcp.pop %v262
    %v265 = vmul.f32 %v254, %v263
    %v266 = vmul.f32 %v256, %v264
    %v267 = vpack.c.bf16 %v265, %v265
    %v268 = vpack.c.bf16 %v266, %v266
    %269 = vrot.lane.b32.xlu0 %v142, 64
    %v270 = vpop.permute.xlu0 %269
    %v272 = vsel %vm147, %v267, 0
    %vm274 = vcmask 1043456
    %v276 = vsel %vm274, %v270, 0
    %278 = vmatprep.subr.bf16.mxu0 0
    %279 = vmatpush1.bf16.msra.mxu0 0
    %280 = vmatprep.subr.bf16.mxu0 0
    %281 = vmatpush1.bf16.msra.mxu0 0
    %282 = vmatprep.subr.bf16.mxu0 0
    %283 = vmatpush1.bf16.msra.mxu0 0
    %284 = vmatprep.subr.bf16.mxu0 0
    %285 = vmatpush1.bf16.msra.mxu0 0
    %286 = vmatprep.subr.bf16.mxu0 0
    %287 = vmatpush1.bf16.msra.mxu0 0
    %288 = vmatprep.subr.bf16.mxu0 0
    %289 = vmatpush1.bf16.msra.mxu0 0
    %290 = vmatprep.subr.bf16.mxu0 0
    %291 = vmatpush1.bf16.msra.mxu0 0
    %292 = vmatprep.subr.bf16.mxu0 0
    %293 = vmatpush1.bf16.msra.mxu0 %v276
    %294 = vmatprep.subr.bf16.mxu0 0
    %295 = vmatpush2.bf16.msra.mxu0 0
    %296 = vmatprep.subr.bf16.mxu0 0
    %297 = vmatpush2.bf16.msra.mxu0 0
    %298 = vmatprep.subr.bf16.mxu0 0
    %299 = vmatpush2.bf16.msra.mxu0 0
    %300 = vmatprep.subr.bf16.mxu0 0
    %301 = vmatpush2.bf16.msra.mxu0 0
    %302 = vmatprep.subr.bf16.mxu0 0
    %303 = vmatpush2.bf16.msra.mxu0 0
    %304 = vmatprep.subr.bf16.mxu0 0
    %305 = vmatpush2.bf16.msra.mxu0 0
    %306 = vmatprep.subr.bf16.mxu0 0
    %307 = vmatpush2.bf16.msra.mxu0 0
    %308 = vmatprep.subr.bf16.mxu0 0
    %309 = vmatpush2.bf16.msra.mxu0 0
    %310 = vmatprep.mubr.bf16.mxu0 0
    %311 = vmatmul.mubr.bf16.gmra.mxu0 %v272
    %v312 = vpop.f32.mrf.mxu0
    %v313 = vadd.f32 0.0, %v312
    %v314 = vpop.f32.mrf.mxu0
    %v315 = vpop.f32.mrf.mxu0
    %v316 = vpop.f32.mrf.mxu0
    %317 = vdwg.mxu0
    %318 = vrot.lane.b32.xlu0 %v143, 64
    %v319 = vpop.permute.xlu0 %318
    %v321 = vsel %vm147, %v268, 0
    %v324 = vsel %vm274, %v319, 0
    %326 = vmatprep.subr.bf16.mxu0 0
    %327 = vmatpush1.bf16.msra.mxu0 0
    %328 = vmatprep.subr.bf16.mxu0 0
    %329 = vmatpush1.bf16.msra.mxu0 0
    %330 = vmatprep.subr.bf16.mxu0 0
    %331 = vmatpush1.bf16.msra.mxu0 0
    %332 = vmatprep.subr.bf16.mxu0 0
    %333 = vmatpush1.bf16.msra.mxu0 0
    %334 = vmatprep.subr.bf16.mxu0 0
    %335 = vmatpush1.bf16.msra.mxu0 0
    %336 = vmatprep.subr.bf16.mxu0 0
    %337 = vmatpush1.bf16.msra.mxu0 0
    %338 = vmatprep.subr.bf16.mxu0 0
    %339 = vmatpush1.bf16.msra.mxu0 0
    %340 = vmatprep.subr.bf16.mxu0 0
    %341 = vmatpush1.bf16.msra.mxu0 %v324
    %342 = vmatprep.subr.bf16.mxu0 0
    %343 = vmatpush2.bf16.msra.mxu0 0
    %344 = vmatprep.subr.bf16.mxu0 0
    %345 = vmatpush2.bf16.msra.mxu0 0
    %346 = vmatprep.subr.bf16.mxu0 0
    %347 = vmatpush2.bf16.msra.mxu0 0
    %348 = vmatprep.subr.bf16.mxu0 0
    %349 = vmatpush2.bf16.msra.mxu0 0
    %350 = vmatprep.subr.bf16.mxu0 0
    %351 = vmatpush2.bf16.msra.mxu0 0
    %352 = vmatprep.subr.bf16.mxu0 0
    %353 = vmatpush2.bf16.msra.mxu0 0
    %354 = vmatprep.subr.bf16.mxu0 0
    %355 = vmatpush2.bf16.msra.mxu0 0
    %356 = vmatprep.subr.bf16.mxu0 0
    %357 = vmatpush2.bf16.msra.mxu0 0
    %358 = vmatprep.mubr.bf16.mxu0 0
    %359 = vmatmul.mubr.bf16.gmra.mxu0 %v321
    %v360 = vpop.f32.mrf.mxu0
    %v361 = vadd.f32 0.0, %v360
    %v362 = vpop.f32.mrf.mxu0
    %v363 = vpop.f32.mrf.mxu0
    %v364 = vpop.f32.mrf.mxu0
    %365 = vdwg.mxu0
    %v366 = vpack.c.bf16 %v361, %v313
    %v367 = vld [vmem:[%s4] sm:$0xf]
    %368 = vrot.lane.b32.xlu0 %v142, 120
    %v369 = vpop.permute.xlu0 %368
    %370 = vrot.lane.b32.xlu0 %v142, 88
    %v371 = vpop.permute.xlu0 %370
    %v373 = vsel %vm147, %v369, 0
    %v376 = vsel %vm147, %v371, 0
    %378 = vmatprep.subr.bf16.mxu0 0
    %379 = vmatpush1.bf16.xpose.msra.mxu0 0
    %380 = vmatprep.subr.bf16.mxu0 0
    %381 = vmatpush1.bf16.xpose.msra.mxu0 0
    %382 = vmatprep.subr.bf16.mxu0 0
    %383 = vmatpush1.bf16.xpose.msra.mxu0 0
    %384 = vmatprep.subr.bf16.mxu0 0
    %385 = vmatpush1.bf16.xpose.msra.mxu0 0
    %386 = vmatprep.subr.bf16.mxu0 0
    %387 = vmatpush1.bf16.xpose.msra.mxu0 0
    %388 = vmatprep.subr.bf16.mxu0 0
    %389 = vmatpush1.bf16.xpose.msra.mxu0 0
    %390 = vmatprep.subr.bf16.mxu0 0
    %391 = vmatpush1.bf16.xpose.msra.mxu0 0
    %392 = vmatprep.subr.bf16.mxu0 0
    %393 = vmatpush1.bf16.xpose.msra.mxu0 %v376
    %394 = vmatprep.subr.bf16.mxu0 0
    %395 = vmatpush2.bf16.xpose.msra.mxu0 0
    %396 = vmatprep.subr.bf16.mxu0 0
    %397 = vmatpush2.bf16.xpose.msra.mxu0 0
    %398 = vmatprep.subr.bf16.mxu0 0
    %399 = vmatpush2.bf16.xpose.msra.mxu0 0
    %400 = vmatprep.subr.bf16.mxu0 0
    %401 = vmatpush2.bf16.xpose.msra.mxu0 0
    %402 = vmatprep.subr.bf16.mxu0 0
    %403 = vmatpush2.bf16.xpose.msra.mxu0 0
    %404 = vmatprep.subr.bf16.mxu0 0
    %405 = vmatpush2.bf16.xpose.msra.mxu0 0
    %406 = vmatprep.subr.bf16.mxu0 0
    %407 = vmatpush2.bf16.xpose.msra.mxu0 0
    %408 = vmatprep.subr.bf16.mxu0 0
    %409 = vmatpush2.bf16.xpose.msra.mxu0 0
    %410 = vmatprep.mubr.bf16.mxu0 0
    %411 = vmatmul.mubr.bf16.gmra.mxu0 %v373
    %v412 = vpop.f32.mrf.mxu0
    %v413 = vadd.f32 0.0, %v412
    %v414 = vpop.f32.mrf.mxu0
    %v415 = vpop.f32.mrf.mxu0
    %v416 = vpop.f32.mrf.mxu0
    %417 = vdwg.mxu0
    %418 = vrot.lane.b32.xlu0 %v143, 120
    %v419 = vpop.permute.xlu0 %418
    %420 = vrot.lane.b32.xlu0 %v143, 88
    %v421 = vpop.permute.xlu0 %420
    %v423 = vsel %vm147, %v419, 0
    %v426 = vsel %vm147, %v421, 0
    %428 = vmatprep.subr.bf16.mxu0 0
    %429 = vmatpush1.bf16.xpose.msra.mxu0 0
    %430 = vmatprep.subr.bf16.mxu0 0
    %431 = vmatpush1.bf16.xpose.msra.mxu0 0
    %432 = vmatprep.subr.bf16.mxu0 0
    %433 = vmatpush1.bf16.xpose.msra.mxu0 0
    %434 = vmatprep.subr.bf16.mxu0 0
    %435 = vmatpush1.bf16.xpose.msra.mxu0 0
    %436 = vmatprep.subr.bf16.mxu0 0
    %437 = vmatpush1.bf16.xpose.msra.mxu0 0
    %438 = vmatprep.subr.bf16.mxu0 0
    %439 = vmatpush1.bf16.xpose.msra.mxu0 0
    %440 = vmatprep.subr.bf16.mxu0 0
    %441 = vmatpush1.bf16.xpose.msra.mxu0 0
    %442 = vmatprep.subr.bf16.mxu0 0
    %443 = vmatpush1.bf16.xpose.msra.mxu0 %v426
    %444 = vmatprep.subr.bf16.mxu0 0
    %445 = vmatpush2.bf16.xpose.msra.mxu0 0
    %446 = vmatprep.subr.bf16.mxu0 0
    %447 = vmatpush2.bf16.xpose.msra.mxu0 0
    %448 = vmatprep.subr.bf16.mxu0 0
    %449 = vmatpush2.bf16.xpose.msra.mxu0 0
    %450 = vmatprep.subr.bf16.mxu0 0
    %451 = vmatpush2.bf16.xpose.msra.mxu0 0
    %452 = vmatprep.subr.bf16.mxu0 0
    %453 = vmatpush2.bf16.xpose.msra.mxu0 0
    %454 = vmatprep.subr.bf16.mxu0 0
    %455 = vmatpush2.bf16.xpose.msra.mxu0 0
    %456 = vmatprep.subr.bf16.mxu0 0
    %457 = vmatpush2.bf16.xpose.msra.mxu0 0
    %458 = vmatprep.subr.bf16.mxu0 0
    %459 = vmatpush2.bf16.xpose.msra.mxu0 0
    %460 = vmatprep.mubr.bf16.mxu0 0
    %461 = vmatmul.mubr.bf16.gmra.mxu0 %v423
    %v462 = vpop.f32.mrf.mxu0
    %v463 = vadd.f32 0.0, %v462
    %v464 = vpop.f32.mrf.mxu0
    %v465 = vpop.f32.mrf.mxu0
    %v466 = vpop.f32.mrf.mxu0
    %467 = vdwg.mxu0
    %v468 = vmul.f32 %v413, 0.17677669
    %v469 = vmul.f32 %v463, 0.17677669
    %v470 = vsel %vm147, %v468, -inf
    %471 = vmax.xlane.f32.xlu0 %v470
    %v472 = vpop.xlane.xlu0 %471
    %v473 = vsel %vm147, %v469, -inf
    %474 = vmax.xlane.f32.xlu0 %v473
    %v475 = vpop.xlane.xlu0 %474
    %v476 = vsub.f32 %v468, %v472
    %v477 = vsub.f32 %v469, %v475
    %v478 = vmul.f32 %v476, 1.442695
    %v479 = vpow.pop %v478
    %v480 = vmul.f32 %v477, 1.442695
    %v481 = vpow.pop %v480
    %v482 = vsel %vm147, %v479, 0.0
    %483 = vadd.xlane.f32.xlu0 %v482
    %v484 = vpop.xlane.xlu0 %483
    %v485 = vsel %vm147, %v481, 0.0
    %486 = vadd.xlane.f32.xlu0 %v485
    %v487 = vpop.xlane.xlu0 %486
    %v488 = vrcp.pop %v484
    %v489 = vrcp.pop %v487
    %v490 = vmul.f32 %v479, %v488
    %v491 = vmul.f32 %v481, %v489
    %v492 = vpack.c.bf16 %v490, %v490
    %v493 = vpack.c.bf16 %v491, %v491
    %494 = vrot.lane.b32.xlu0 %v142, 56
    %v495 = vpop.permute.xlu0 %494
    %v497 = vsel %vm147, %v492, 0
    %v500 = vsel %vm274, %v495, 0
    %502 = vmatprep.subr.bf16.mxu0 0
    %503 = vmatpush1.bf16.msra.mxu0 0
    %504 = vmatprep.subr.bf16.mxu0 0
    %505 = vmatpush1.bf16.msra.mxu0 0
    %506 = vmatprep.subr.bf16.mxu0 0
    %507 = vmatpush1.bf16.msra.mxu0 0
    %508 = vmatprep.subr.bf16.mxu0 0
    %509 = vmatpush1.bf16.msra.mxu0 0
    %510 = vmatprep.subr.bf16.mxu0 0
    %511 = vmatpush1.bf16.msra.mxu0 0
    %512 = vmatprep.subr.bf16.mxu0 0
    %513 = vmatpush1.bf16.msra.mxu0 0
    %514 = vmatprep.subr.bf16.mxu0 0
    %515 = vmatpush1.bf16.msra.mxu0 0
    %516 = vmatprep.subr.bf16.mxu0 0
    %517 = vmatpush1.bf16.msra.mxu0 %v500
    %518 = vmatprep.subr.bf16.mxu0 0
    %519 = vmatpush2.bf16.msra.mxu0 0
    %520 = vmatprep.subr.bf16.mxu0 0
    %521 = vmatpush2.bf16.msra.mxu0 0
    %522 = vmatprep.subr.bf16.mxu0 0
    %523 = vmatpush2.bf16.msra.mxu0 0
    %524 = vmatprep.subr.bf16.mxu0 0
    %525 = vmatpush2.bf16.msra.mxu0 0
    %526 = vmatprep.subr.bf16.mxu0 0
    %527 = vmatpush2.bf16.msra.mxu0 0
    %528 = vmatprep.subr.bf16.mxu0 0
    %529 = vmatpush2.bf16.msra.mxu0 0
    %530 = vmatprep.subr.bf16.mxu0 0
    %531 = vmatpush2.bf16.msra.mxu0 0
    %532 = vmatprep.subr.bf16.mxu0 0
    %533 = vmatpush2.bf16.msra.mxu0 0
    %534 = vmatprep.mubr.bf16.mxu0 0
    %535 = vmatmul.mubr.bf16.gmra.mxu0 %v497
    %v536 = vpop.f32.mrf.mxu0
    %v537 = vadd.f32 0.0, %v536
    %v538 = vpop.f32.mrf.mxu0
    %v539 = vpop.f32.mrf.mxu0
    %v540 = vpop.f32.mrf.mxu0
    %541 = vdwg.mxu0
    %542 = vrot.lane.b32.xlu0 %v143, 56
    %v543 = vpop.permute.xlu0 %542
    %v545 = vsel %vm147, %v493, 0
    %v548 = vsel %vm274, %v543, 0
    %550 = vmatprep.subr.bf16.mxu0 0
    %551 = vmatpush1.bf16.msra.mxu0 0
    %552 = vmatprep.subr.bf16.mxu0 0
    %553 = vmatpush1.bf16.msra.mxu0 0
    %554 = vmatprep.subr.bf16.mxu0 0
    %555 = vmatpush1.bf16.msra.mxu0 0
    %556 = vmatprep.subr.bf16.mxu0 0
    %557 = vmatpush1.bf16.msra.mxu0 0
    %558 = vmatprep.subr.bf16.mxu0 0
    %559 = vmatpush1.bf16.msra.mxu0 0
    %560 = vmatprep.subr.bf16.mxu0 0
    %561 = vmatpush1.bf16.msra.mxu0 0
    %562 = vmatprep.subr.bf16.mxu0 0
    %563 = vmatpush1.bf16.msra.mxu0 0
    %564 = vmatprep.subr.bf16.mxu0 0
    %565 = vmatpush1.bf16.msra.mxu0 %v548
    %566 = vmatprep.subr.bf16.mxu0 0
    %567 = vmatpush2.bf16.msra.mxu0 0
    %568 = vmatprep.subr.bf16.mxu0 0
    %569 = vmatpush2.bf16.msra.mxu0 0
    %570 = vmatprep.subr.bf16.mxu0 0
    %571 = vmatpush2.bf16.msra.mxu0 0
    %572 = vmatprep.subr.bf16.mxu0 0
    %573 = vmatpush2.bf16.msra.mxu0 0
    %574 = vmatprep.subr.bf16.mxu0 0
    %575 = vmatpush2.bf16.msra.mxu0 0
    %576 = vmatprep.subr.bf16.mxu0 0
    %577 = vmatpush2.bf16.msra.mxu0 0
    %578 = vmatprep.subr.bf16.mxu0 0
    %579 = vmatpush2.bf16.msra.mxu0 0
    %580 = vmatprep.subr.bf16.mxu0 0
    %581 = vmatpush2.bf16.msra.mxu0 0
    %582 = vmatprep.mubr.bf16.mxu0 0
    %583 = vmatmul.mubr.bf16.gmra.mxu0 %v545
    %v584 = vpop.f32.mrf.mxu0
    %v585 = vadd.f32 0.0, %v584
    %v586 = vpop.f32.mrf.mxu0
    %v587 = vpop.f32.mrf.mxu0
    %v588 = vpop.f32.mrf.mxu0
    %589 = vdwg.mxu0
    %v590 = vpack.c.bf16 %v585, %v537
    %s591 = scalar_lea.vmem %s4, 4
    %v592 = vld [vmem:[%s591] sm:$0xf]
    %v594 = vsel %vm147, %v590, 0
    %v597 = vsel %vm274, %v592, 0
    %599 = vmatprep.subr.bf16.mxu0 0
    %600 = vmatpush1.bf16.msra.mxu0 0
    %601 = vmatprep.subr.bf16.mxu0 0
    %602 = vmatpush1.bf16.msra.mxu0 0
    %603 = vmatprep.subr.bf16.mxu0 0
    %604 = vmatpush1.bf16.msra.mxu0 0
    %605 = vmatprep.subr.bf16.mxu0 0
    %606 = vmatpush1.bf16.msra.mxu0 0
    %607 = vmatprep.subr.bf16.mxu0 0
    %608 = vmatpush1.bf16.msra.mxu0 0
    %609 = vmatprep.subr.bf16.mxu0 0
    %610 = vmatpush1.bf16.msra.mxu0 0
    %611 = vmatprep.subr.bf16.mxu0 0
    %612 = vmatpush1.bf16.msra.mxu0 0
    %613 = vmatprep.subr.bf16.mxu0 0
    %614 = vmatpush1.bf16.msra.mxu0 %v597
    %615 = vmatprep.subr.bf16.mxu0 0
    %616 = vmatpush2.bf16.msra.mxu0 0
    %617 = vmatprep.subr.bf16.mxu0 0
    %618 = vmatpush2.bf16.msra.mxu0 0
    %619 = vmatprep.subr.bf16.mxu0 0
    %620 = vmatpush2.bf16.msra.mxu0 0
    %621 = vmatprep.subr.bf16.mxu0 0
    %622 = vmatpush2.bf16.msra.mxu0 0
    %623 = vmatprep.subr.bf16.mxu0 0
    %624 = vmatpush2.bf16.msra.mxu0 0
    %625 = vmatprep.subr.bf16.mxu0 0
    %626 = vmatpush2.bf16.msra.mxu0 0
    %627 = vmatprep.subr.bf16.mxu0 0
    %628 = vmatpush2.bf16.msra.mxu0 0
    %629 = vmatprep.subr.bf16.mxu0 0
    %630 = vmatpush2.bf16.msra.mxu0 0
    %631 = vmatprep.mubr.bf16.mxu0 0
    %632 = vmatmul.mubr.bf16.gmra.mxu0 %v594
    %v633 = vpop.f32.mrf.mxu0
    %v634 = vadd.f32 0.0, %v633
    %v635 = vpop.f32.mrf.mxu0
    %v636 = vpop.f32.mrf.mxu0
    %v637 = vadd.f32 0.0, %v636
    %v638 = vpop.f32.mrf.mxu0
    %639 = vdwg.mxu0
    %v641 = vsel %vm147, %v366, 0
    %v644 = vsel %vm274, %v367, 0
    %646 = vmatprep.subr.bf16.mxu0 0
    %647 = vmatpush1.bf16.msra.mxu0 0
    %648 = vmatprep.subr.bf16.mxu0 0
    %649 = vmatpush1.bf16.msra.mxu0 0
    %650 = vmatprep.subr.bf16.mxu0 0
    %651 = vmatpush1.bf16.msra.mxu0 0
    %652 = vmatprep.subr.bf16.mxu0 0
    %653 = vmatpush1.bf16.msra.mxu0 0
    %654 = vmatprep.subr.bf16.mxu0 0
    %655 = vmatpush1.bf16.msra.mxu0 0
    %656 = vmatprep.subr.bf16.mxu0 0
    %657 = vmatpush1.bf16.msra.mxu0 0
    %658 = vmatprep.subr.bf16.mxu0 0
    %659 = vmatpush1.bf16.msra.mxu0 0
    %660 = vmatprep.subr.bf16.mxu0 0
    %661 = vmatpush1.bf16.msra.mxu0 %v644
    %662 = vmatprep.subr.bf16.mxu0 0
    %663 = vmatpush2.bf16.msra.mxu0 0
    %664 = vmatprep.subr.bf16.mxu0 0
    %665 = vmatpush2.bf16.msra.mxu0 0
    %666 = vmatprep.subr.bf16.mxu0 0
    %667 = vmatpush2.bf16.msra.mxu0 0
    %668 = vmatprep.subr.bf16.mxu0 0
    %669 = vmatpush2.bf16.msra.mxu0 0
    %670 = vmatprep.subr.bf16.mxu0 0
    %671 = vmatpush2.bf16.msra.mxu0 0
    %672 = vmatprep.subr.bf16.mxu0 0
    %673 = vmatpush2.bf16.msra.mxu0 0
    %674 = vmatprep.subr.bf16.mxu0 0
    %675 = vmatpush2.bf16.msra.mxu0 0
    %676 = vmatprep.subr.bf16.mxu0 0
    %677 = vmatpush2.bf16.msra.mxu0 0
    %678 = vmatprep.mubr.bf16.mxu0 0
    %679 = vmatmul.mubr.bf16.gmra.mxu0 %v641
    %v680 = vpop.f32.mrf.mxu0
    %v681 = vadd.f32 %v634, %v680
    %v682 = vpop.f32.mrf.mxu0
    %v683 = vpop.f32.mrf.mxu0
    %v684 = vadd.f32 %v637, %v683
    %v685 = vpop.f32.mrf.mxu0
    %686 = vdwg.mxu0
    %687 = vrot.lane.b32.xlu0 %v142, 112
    %v688 = vpop.permute.xlu0 %687
    %689 = vrot.lane.b32.xlu0 %v142, 80
    %v690 = vpop.permute.xlu0 %689
    %v692 = vsel %vm147, %v688, 0
    %v695 = vsel %vm147, %v690, 0
    %697 = vmatprep.subr.bf16.mxu0 0
    %698 = vmatpush1.bf16.xpose.msra.mxu0 0
    %699 = vmatprep.subr.bf16.mxu0 0
    %700 = vmatpush1.bf16.xpose.msra.mxu0 0
    %701 = vmatprep.subr.bf16.mxu0 0
    %702 = vmatpush1.bf16.xpose.msra.mxu0 0
    %703 = vmatprep.subr.bf16.mxu0 0
    %704 = vmatpush1.bf16.xpose.msra.mxu0 0
    %705 = vmatprep.subr.bf16.mxu0 0
    %706 = vmatpush1.bf16.xpose.msra.mxu0 0
    %707 = vmatprep.subr.bf16.mxu0 0
    %708 = vmatpush1.bf16.xpose.msra.mxu0 0
    %709 = vmatprep.subr.bf16.mxu0 0
    %710 = vmatpush1.bf16.xpose.msra.mxu0 0
    %711 = vmatprep.subr.bf16.mxu0 0
    %712 = vmatpush1.bf16.xpose.msra.mxu0 %v695
    %713 = vmatprep.subr.bf16.mxu0 0
    %714 = vmatpush2.bf16.xpose.msra.mxu0 0
    %715 = vmatprep.subr.bf16.mxu0 0
    %716 = vmatpush2.bf16.xpose.msra.mxu0 0
    %717 = vmatprep.subr.bf16.mxu0 0
    %718 = vmatpush2.bf16.xpose.msra.mxu0 0
    %719 = vmatprep.subr.bf16.mxu0 0
    %720 = vmatpush2.bf16.xpose.msra.mxu0 0
    %721 = vmatprep.subr.bf16.mxu0 0
    %722 = vmatpush2.bf16.xpose.msra.mxu0 0
    %723 = vmatprep.subr.bf16.mxu0 0
    %724 = vmatpush2.bf16.xpose.msra.mxu0 0
    %725 = vmatprep.subr.bf16.mxu0 0
    %726 = vmatpush2.bf16.xpose.msra.mxu0 0
    %727 = vmatprep.subr.bf16.mxu0 0
    %728 = vmatpush2.bf16.xpose.msra.mxu0 0
    %729 = vmatprep.mubr.bf16.mxu0 0
    %730 = vmatmul.mubr.bf16.gmra.mxu0 %v692
    %v731 = vpop.f32.mrf.mxu0
    %v732 = vadd.f32 0.0, %v731
    %v733 = vpop.f32.mrf.mxu0
    %v734 = vpop.f32.mrf.mxu0
    %v735 = vpop.f32.mrf.mxu0
    %736 = vdwg.mxu0
    %737 = vrot.lane.b32.xlu0 %v143, 112
    %v738 = vpop.permute.xlu0 %737
    %739 = vrot.lane.b32.xlu0 %v143, 80
    %v740 = vpop.permute.xlu0 %739
    %v742 = vsel %vm147, %v738, 0
    %v745 = vsel %vm147, %v740, 0
    %747 = vmatprep.subr.bf16.mxu0 0
    %748 = vmatpush1.bf16.xpose.msra.mxu0 0
    %749 = vmatprep.subr.bf16.mxu0 0
    %750 = vmatpush1.bf16.xpose.msra.mxu0 0
    %751 = vmatprep.subr.bf16.mxu0 0
    %752 = vmatpush1.bf16.xpose.msra.mxu0 0
    %753 = vmatprep.subr.bf16.mxu0 0
    %754 = vmatpush1.bf16.xpose.msra.mxu0 0
    %755 = vmatprep.subr.bf16.mxu0 0
    %756 = vmatpush1.bf16.xpose.msra.mxu0 0
    %757 = vmatprep.subr.bf16.mxu0 0
    %758 = vmatpush1.bf16.xpose.msra.mxu0 0
    %759 = vmatprep.subr.bf16.mxu0 0
    %760 = vmatpush1.bf16.xpose.msra.mxu0 0
    %761 = vmatprep.subr.bf16.mxu0 0
    %762 = vmatpush1.bf16.xpose.msra.mxu0 %v745
    %763 = vmatprep.subr.bf16.mxu0 0
    %764 = vmatpush2.bf16.xpose.msra.mxu0 0
    %765 = vmatprep.subr.bf16.mxu0 0
    %766 = vmatpush2.bf16.xpose.msra.mxu0 0
    %767 = vmatprep.subr.bf16.mxu0 0
    %768 = vmatpush2.bf16.xpose.msra.mxu0 0
    %769 = vmatprep.subr.bf16.mxu0 0
    %770 = vmatpush2.bf16.xpose.msra.mxu0 0
    %771 = vmatprep.subr.bf16.mxu0 0
    %772 = vmatpush2.bf16.xpose.msra.mxu0 0
    %773 = vmatprep.subr.bf16.mxu0 0
    %774 = vmatpush2.bf16.xpose.msra.mxu0 0
    %775 = vmatprep.subr.bf16.mxu0 0
    %776 = vmatpush2.bf16.xpose.msra.mxu0 0
    %777 = vmatprep.subr.bf16.mxu0 0
    %778 = vmatpush2.bf16.xpose.msra.mxu0 0
    %779 = vmatprep.mubr.bf16.mxu0 0
    %780 = vmatmul.mubr.bf16.gmra.mxu0 %v742
    %v781 = vpop.f32.mrf.mxu0
    %v782 = vadd.f32 0.0, %v781
    %v783 = vpop.f32.mrf.mxu0
    %v784 = vpop.f32.mrf.mxu0
    %v785 = vpop.f32.mrf.mxu0
    %786 = vdwg.mxu0
    %v787 = vmul.f32 %v732, 0.17677669
    %v788 = vmul.f32 %v782, 0.17677669
    %v789 = vsel %vm147, %v787, -inf
    %790 = vmax.xlane.f32.xlu0 %v789
    %v791 = vpop.xlane.xlu0 %790
    %v792 = vsel %vm147, %v788, -inf
    %793 = vmax.xlane.f32.xlu0 %v792
    %v794 = vpop.xlane.xlu0 %793
    %v795 = vsub.f32 %v787, %v791
    %v796 = vsub.f32 %v788, %v794
    %v797 = vmul.f32 %v795, 1.442695
    %v798 = vpow.pop %v797
    %v799 = vmul.f32 %v796, 1.442695
    %v800 = vpow.pop %v799
    %v801 = vsel %vm147, %v798, 0.0
    %802 = vadd.xlane.f32.xlu0 %v801
    %v803 = vpop.xlane.xlu0 %802
    %v804 = vsel %vm147, %v800, 0.0
    %805 = vadd.xlane.f32.xlu0 %v804
    %v806 = vpop.xlane.xlu0 %805
    %v807 = vrcp.pop %v803
    %v808 = vrcp.pop %v806
    %v809 = vmul.f32 %v798, %v807
    %v810 = vmul.f32 %v800, %v808
    %v811 = vpack.c.bf16 %v809, %v809
    %v812 = vpack.c.bf16 %v810, %v810
    %813 = vrot.lane.b32.xlu0 %v142, 48
    %v814 = vpop.permute.xlu0 %813
    %v816 = vsel %vm147, %v811, 0
    %v819 = vsel %vm274, %v814, 0
    %821 = vmatprep.subr.bf16.mxu0 0
    %822 = vmatpush1.bf16.msra.mxu0 0
    %823 = vmatprep.subr.bf16.mxu0 0
    %824 = vmatpush1.bf16.msra.mxu0 0
    %825 = vmatprep.subr.bf16.mxu0 0
    %826 = vmatpush1.bf16.msra.mxu0 0
    %827 = vmatprep.subr.bf16.mxu0 0
    %828 = vmatpush1.bf16.msra.mxu0 0
    %829 = vmatprep.subr.bf16.mxu0 0
    %830 = vmatpush1.bf16.msra.mxu0 0
    %831 = vmatprep.subr.bf16.mxu0 0
    %832 = vmatpush1.bf16.msra.mxu0 0
    %833 = vmatprep.subr.bf16.mxu0 0
    %834 = vmatpush1.bf16.msra.mxu0 0
    %835 = vmatprep.subr.bf16.mxu0 0
    %836 = vmatpush1.bf16.msra.mxu0 %v819
    %837 = vmatprep.subr.bf16.mxu0 0
    %838 = vmatpush2.bf16.msra.mxu0 0
    %839 = vmatprep.subr.bf16.mxu0 0
    %840 = vmatpush2.bf16.msra.mxu0 0
    %841 = vmatprep.subr.bf16.mxu0 0
    %842 = vmatpush2.bf16.msra.mxu0 0
    %843 = vmatprep.subr.bf16.mxu0 0
    %844 = vmatpush2.bf16.msra.mxu0 0
    %845 = vmatprep.subr.bf16.mxu0 0
    %846 = vmatpush2.bf16.msra.mxu0 0
    %847 = vmatprep.subr.bf16.mxu0 0
    %848 = vmatpush2.bf16.msra.mxu0 0
    %849 = vmatprep.subr.bf16.mxu0 0
    %850 = vmatpush2.bf16.msra.mxu0 0
    %851 = vmatprep.subr.bf16.mxu0 0
    %852 = vmatpush2.bf16.msra.mxu0 0
    %853 = vmatprep.mubr.bf16.mxu0 0
    %854 = vmatmul.mubr.bf16.gmra.mxu0 %v816
    %v855 = vpop.f32.mrf.mxu0
    %v856 = vadd.f32 0.0, %v855
    %v857 = vpop.f32.mrf.mxu0
    %v858 = vpop.f32.mrf.mxu0
    %v859 = vpop.f32.mrf.mxu0
    %860 = vdwg.mxu0
    %861 = vrot.lane.b32.xlu0 %v143, 48
    %v862 = vpop.permute.xlu0 %861
    %v864 = vsel %vm147, %v812, 0
    %v867 = vsel %vm274, %v862, 0
    %869 = vmatprep.subr.bf16.mxu0 0
    %870 = vmatpush1.bf16.msra.mxu0 0
    %871 = vmatprep.subr.bf16.mxu0 0
    %872 = vmatpush1.bf16.msra.mxu0 0
    %873 = vmatprep.subr.bf16.mxu0 0
    %874 = vmatpush1.bf16.msra.mxu0 0
    %875 = vmatprep.subr.bf16.mxu0 0
    %876 = vmatpush1.bf16.msra.mxu0 0
    %877 = vmatprep.subr.bf16.mxu0 0
    %878 = vmatpush1.bf16.msra.mxu0 0
    %879 = vmatprep.subr.bf16.mxu0 0
    %880 = vmatpush1.bf16.msra.mxu0 0
    %881 = vmatprep.subr.bf16.mxu0 0
    %882 = vmatpush1.bf16.msra.mxu0 0
    %883 = vmatprep.subr.bf16.mxu0 0
    %884 = vmatpush1.bf16.msra.mxu0 %v867
    %885 = vmatprep.subr.bf16.mxu0 0
    %886 = vmatpush2.bf16.msra.mxu0 0
    %887 = vmatprep.subr.bf16.mxu0 0
    %888 = vmatpush2.bf16.msra.mxu0 0
    %889 = vmatprep.subr.bf16.mxu0 0
    %890 = vmatpush2.bf16.msra.mxu0 0
    %891 = vmatprep.subr.bf16.mxu0 0
    %892 = vmatpush2.bf16.msra.mxu0 0
    %893 = vmatprep.subr.bf16.mxu0 0
    %894 = vmatpush2.bf16.msra.mxu0 0
    %895 = vmatprep.subr.bf16.mxu0 0
    %896 = vmatpush2.bf16.msra.mxu0 0
    %897 = vmatprep.subr.bf16.mxu0 0
    %898 = vmatpush2.bf16.msra.mxu0 0
    %899 = vmatprep.subr.bf16.mxu0 0
    %900 = vmatpush2.bf16.msra.mxu0 0
    %901 = vmatprep.mubr.bf16.mxu0 0
    %902 = vmatmul.mubr.bf16.gmra.mxu0 %v864
    %v903 = vpop.f32.mrf.mxu0
    %v904 = vadd.f32 0.0, %v903
    %v905 = vpop.f32.mrf.mxu0
    %v906 = vpop.f32.mrf.mxu0
    %v907 = vpop.f32.mrf.mxu0
    %908 = vdwg.mxu0
    %v909 = vpack.c.bf16 %v904, %v856
    %s910 = scalar_lea.vmem %s4, 8
    %v911 = vld [vmem:[%s910] sm:$0xf]
    %v913 = vsel %vm147, %v909, 0
    %v916 = vsel %vm274, %v911, 0
    %918 = vmatprep.subr.bf16.mxu0 0
    %919 = vmatpush1.bf16.msra.mxu0 0
    %920 = vmatprep.subr.bf16.mxu0 0
    %921 = vmatpush1.bf16.msra.mxu0 0
    %922 = vmatprep.subr.bf16.mxu0 0
    %923 = vmatpush1.bf16.msra.mxu0 0
    %924 = vmatprep.subr.bf16.mxu0 0
    %925 = vmatpush1.bf16.msra.mxu0 0
    %926 = vmatprep.subr.bf16.mxu0 0
    %927 = vmatpush1.bf16.msra.mxu0 0
    %928 = vmatprep.subr.bf16.mxu0 0
    %929 = vmatpush1.bf16.msra.mxu0 0
    %930 = vmatprep.subr.bf16.mxu0 0
    %931 = vmatpush1.bf16.msra.mxu0 0
    %932 = vmatprep.subr.bf16.mxu0 0
    %933 = vmatpush1.bf16.msra.mxu0 %v916
    %934 = vmatprep.subr.bf16.mxu0 0
    %935 = vmatpush2.bf16.msra.mxu0 0
    %936 = vmatprep.subr.bf16.mxu0 0
    %937 = vmatpush2.bf16.msra.mxu0 0
    %938 = vmatprep.subr.bf16.mxu0 0
    %939 = vmatpush2.bf16.msra.mxu0 0
    %940 = vmatprep.subr.bf16.mxu0 0
    %941 = vmatpush2.bf16.msra.mxu0 0
    %942 = vmatprep.subr.bf16.mxu0 0
    %943 = vmatpush2.bf16.msra.mxu0 0
    %944 = vmatprep.subr.bf16.mxu0 0
    %945 = vmatpush2.bf16.msra.mxu0 0
    %946 = vmatprep.subr.bf16.mxu0 0
    %947 = vmatpush2.bf16.msra.mxu0 0
    %948 = vmatprep.subr.bf16.mxu0 0
    %949 = vmatpush2.bf16.msra.mxu0 0
    %950 = vmatprep.mubr.bf16.mxu0 0
    %951 = vmatmul.mubr.bf16.gmra.mxu0 %v913
    %v952 = vpop.f32.mrf.mxu0
    %v953 = vadd.f32 0.0, %v952
    %v954 = vpop.f32.mrf.mxu0
    %v955 = vpop.f32.mrf.mxu0
    %v956 = vadd.f32 0.0, %v955
    %v957 = vpop.f32.mrf.mxu0
    %958 = vdwg.mxu0
    %v959 = vadd.f32 %v681, %v953
    %v960 = vadd.f32 %v684, %v956
    %961 = vrot.lane.b32.xlu0 %v142, 104
    %v962 = vpop.permute.xlu0 %961
    %963 = vrot.lane.b32.xlu0 %v142, 72
    %v964 = vpop.permute.xlu0 %963
    %v966 = vsel %vm147, %v962, 0
    %v969 = vsel %vm147, %v964, 0
    %971 = vmatprep.subr.bf16.mxu0 0
    %972 = vmatpush1.bf16.xpose.msra.mxu0 0
    %973 = vmatprep.subr.bf16.mxu0 0
    %974 = vmatpush1.bf16.xpose.msra.mxu0 0
    %975 = vmatprep.subr.bf16.mxu0 0
    %976 = vmatpush1.bf16.xpose.msra.mxu0 0
    %977 = vmatprep.subr.bf16.mxu0 0
    %978 = vmatpush1.bf16.xpose.msra.mxu0 0
    %979 = vmatprep.subr.bf16.mxu0 0
    %980 = vmatpush1.bf16.xpose.msra.mxu0 0
    %981 = vmatprep.subr.bf16.mxu0 0
    %982 = vmatpush1.bf16.xpose.msra.mxu0 0
    %983 = vmatprep.subr.bf16.mxu0 0
    %984 = vmatpush1.bf16.xpose.msra.mxu0 0
    %985 = vmatprep.subr.bf16.mxu0 0
    %986 = vmatpush1.bf16.xpose.msra.mxu0 %v969
    %987 = vmatprep.subr.bf16.mxu0 0
    %988 = vmatpush2.bf16.xpose.msra.mxu0 0
    %989 = vmatprep.subr.bf16.mxu0 0
    %990 = vmatpush2.bf16.xpose.msra.mxu0 0
    %991 = vmatprep.subr.bf16.mxu0 0
    %992 = vmatpush2.bf16.xpose.msra.mxu0 0
    %993 = vmatprep.subr.bf16.mxu0 0
    %994 = vmatpush2.bf16.xpose.msra.mxu0 0
    %995 = vmatprep.subr.bf16.mxu0 0
    %996 = vmatpush2.bf16.xpose.msra.mxu0 0
    %997 = vmatprep.subr.bf16.mxu0 0
    %998 = vmatpush2.bf16.xpose.msra.mxu0 0
    %999 = vmatprep.subr.bf16.mxu0 0
    %1000 = vmatpush2.bf16.xpose.msra.mxu0 0
    %1001 = vmatprep.subr.bf16.mxu0 0
    %1002 = vmatpush2.bf16.xpose.msra.mxu0 0
    %1003 = vmatprep.mubr.bf16.mxu0 0
    %1004 = vmatmul.mubr.bf16.gmra.mxu0 %v966
    %v1005 = vpop.f32.mrf.mxu0
    %v1006 = vadd.f32 0.0, %v1005
    %v1007 = vpop.f32.mrf.mxu0
    %v1008 = vpop.f32.mrf.mxu0
    %v1009 = vpop.f32.mrf.mxu0
    %1010 = vdwg.mxu0
    %1011 = vrot.lane.b32.xlu0 %v143, 104
    %v1012 = vpop.permute.xlu0 %1011
    %1013 = vrot.lane.b32.xlu0 %v143, 72
    %v1014 = vpop.permute.xlu0 %1013
    %v1016 = vsel %vm147, %v1012, 0
    %v1019 = vsel %vm147, %v1014, 0
    %1021 = vmatprep.subr.bf16.mxu0 0
    %1022 = vmatpush1.bf16.xpose.msra.mxu0 0
    %1023 = vmatprep.subr.bf16.mxu0 0
    %1024 = vmatpush1.bf16.xpose.msra.mxu0 0
    %1025 = vmatprep.subr.bf16.mxu0 0
    %1026 = vmatpush1.bf16.xpose.msra.mxu0 0
    %1027 = vmatprep.subr.bf16.mxu0 0
    %1028 = vmatpush1.bf16.xpose.msra.mxu0 0
    %1029 = vmatprep.subr.bf16.mxu0 0
    %1030 = vmatpush1.bf16.xpose.msra.mxu0 0
    %1031 = vmatprep.subr.bf16.mxu0 0
    %1032 = vmatpush1.bf16.xpose.msra.mxu0 0
    %1033 = vmatprep.subr.bf16.mxu0 0
    %1034 = vmatpush1.bf16.xpose.msra.mxu0 0
    %1035 = vmatprep.subr.bf16.mxu0 0
    %1036 = vmatpush1.bf16.xpose.msra.mxu0 %v1019
    %1037 = vmatprep.subr.bf16.mxu0 0
    %1038 = vmatpush2.bf16.xpose.msra.mxu0 0
    %1039 = vmatprep.subr.bf16.mxu0 0
    %1040 = vmatpush2.bf16.xpose.msra.mxu0 0
    %1041 = vmatprep.subr.bf16.mxu0 0
    %1042 = vmatpush2.bf16.xpose.msra.mxu0 0
    %1043 = vmatprep.subr.bf16.mxu0 0
    %1044 = vmatpush2.bf16.xpose.msra.mxu0 0
    %1045 = vmatprep.subr.bf16.mxu0 0
    %1046 = vmatpush2.bf16.xpose.msra.mxu0 0
    %1047 = vmatprep.subr.bf16.mxu0 0
    %1048 = vmatpush2.bf16.xpose.msra.mxu0 0
    %1049 = vmatprep.subr.bf16.mxu0 0
    %1050 = vmatpush2.bf16.xpose.msra.mxu0 0
    %1051 = vmatprep.subr.bf16.mxu0 0
    %1052 = vmatpush2.bf16.xpose.msra.mxu0 0
    %1053 = vmatprep.mubr.bf16.mxu0 0
    %1054 = vmatmul.mubr.bf16.gmra.mxu0 %v1016
    %v1055 = vpop.f32.mrf.mxu0
    %v1056 = vadd.f32 0.0, %v1055
    %v1057 = vpop.f32.mrf.mxu0
    %v1058 = vpop.f32.mrf.mxu0
    %v1059 = vpop.f32.mrf.mxu0
    %1060 = vdwg.mxu0
    %v1061 = vmul.f32 %v1006, 0.17677669
    %v1062 = vmul.f32 %v1056, 0.17677669
    %v1063 = vsel %vm147, %v1061, -inf
    %1064 = vmax.xlane.f32.xlu0 %v1063
    %v1065 = vpop.xlane.xlu0 %1064
    %v1066 = vsel %vm147, %v1062, -inf
    %1067 = vmax.xlane.f32.xlu0 %v1066
    %v1068 = vpop.xlane.xlu0 %1067
    %v1069 = vsub.f32 %v1061, %v1065
    %v1070 = vsub.f32 %v1062, %v1068
    %v1071 = vmul.f32 %v1069, 1.442695
    %v1072 = vpow.pop %v1071
    %v1073 = vmul.f32 %v1070, 1.442695
    %v1074 = vpow.pop %v1073
    %v1075 = vsel %vm147, %v1072, 0.0
    %1076 = vadd.xlane.f32.xlu0 %v1075
    %v1077 = vpop.xlane.xlu0 %1076
    %v1078 = vsel %vm147, %v1074, 0.0
    %1079 = vadd.xlane.f32.xlu0 %v1078
    %v1080 = vpop.xlane.xlu0 %1079
    %v1081 = vrcp.pop %v1077
    %v1082 = vrcp.pop %v1080
    %v1083 = vmul.f32 %v1072, %v1081
    %v1084 = vmul.f32 %v1074, %v1082
    %v1085 = vpack.c.bf16 %v1083, %v1083
    %v1086 = vpack.c.bf16 %v1084, %v1084
    %1087 = vrot.lane.b32.xlu0 %v142, 40
    %v1088 = vpop.permute.xlu0 %1087
    %v1090 = vsel %vm147, %v1085, 0
    %v1093 = vsel %vm274, %v1088, 0
    %1095 = vmatprep.subr.bf16.mxu0 0
    %1096 = vmatpush1.bf16.msra.mxu0 0
    %1097 = vmatprep.subr.bf16.mxu0 0
    %1098 = vmatpush1.bf16.msra.mxu0 0
    %1099 = vmatprep.subr.bf16.mxu0 0
    %1100 = vmatpush1.bf16.msra.mxu0 0
    %1101 = vmatprep.subr.bf16.mxu0 0
    %1102 = vmatpush1.bf16.msra.mxu0 0
    %1103 = vmatprep.subr.bf16.mxu0 0
    %1104 = vmatpush1.bf16.msra.mxu0 0
    %1105 = vmatprep.subr.bf16.mxu0 0
    %1106 = vmatpush1.bf16.msra.mxu0 0
    %1107 = vmatprep.subr.bf16.mxu0 0
    %1108 = vmatpush1.bf16.msra.mxu0 0
    %1109 = vmatprep.subr.bf16.mxu0 0
    %1110 = vmatpush1.bf16.msra.mxu0 %v1093
    %1111 = vmatprep.subr.bf16.mxu0 0
    %1112 = vmatpush2.bf16.msra.mxu0 0
    %1113 = vmatprep.subr.bf16.mxu0 0
    %1114 = vmatpush2.bf16.msra.mxu0 0
    %1115 = vmatprep.subr.bf16.mxu0 0
    %1116 = vmatpush2.bf16.msra.mxu0 0
    %1117 = vmatprep.subr.bf16.mxu0 0
    %1118 = vmatpush2.bf16.msra.mxu0 0
    %1119 = vmatprep.subr.bf16.mxu0 0
    %1120 = vmatpush2.bf16.msra.mxu0 0
    %1121 = vmatprep.subr.bf16.mxu0 0
    %1122 = vmatpush2.bf16.msra.mxu0 0
    %1123 = vmatprep.subr.bf16.mxu0 0
    %1124 = vmatpush2.bf16.msra.mxu0 0
    %1125 = vmatprep.subr.bf16.mxu0 0
    %1126 = vmatpush2.bf16.msra.mxu0 0
    %1127 = vmatprep.mubr.bf16.mxu0 0
    %1128 = vmatmul.mubr.bf16.gmra.mxu0 %v1090
    %v1129 = vpop.f32.mrf.mxu0
    %v1130 = vadd.f32 0.0, %v1129
    %v1131 = vpop.f32.mrf.mxu0
    %v1132 = vpop.f32.mrf.mxu0
    %v1133 = vpop.f32.mrf.mxu0
    %1134 = vdwg.mxu0
    %1135 = vrot.lane.b32.xlu0 %v143, 40
    %v1136 = vpop.permute.xlu0 %1135
    %v1138 = vsel %vm147, %v1086, 0
    %v1141 = vsel %vm274, %v1136, 0
    %1143 = vmatprep.subr.bf16.mxu0 0
    %1144 = vmatpush1.bf16.msra.mxu0 0
    %1145 = vmatprep.subr.bf16.mxu0 0
    %1146 = vmatpush1.bf16.msra.mxu0 0
    %1147 = vmatprep.subr.bf16.mxu0 0
    %1148 = vmatpush1.bf16.msra.mxu0 0
    %1149 = vmatprep.subr.bf16.mxu0 0
    %1150 = vmatpush1.bf16.msra.mxu0 0
    %1151 = vmatprep.subr.bf16.mxu0 0
    %1152 = vmatpush1.bf16.msra.mxu0 0
    %1153 = vmatprep.subr.bf16.mxu0 0
    %1154 = vmatpush1.bf16.msra.mxu0 0
    %1155 = vmatprep.subr.bf16.mxu0 0
    %1156 = vmatpush1.bf16.msra.mxu0 0
    %1157 = vmatprep.subr.bf16.mxu0 0
    %1158 = vmatpush1.bf16.msra.mxu0 %v1141
    %1159 = vmatprep.subr.bf16.mxu0 0
    %1160 = vmatpush2.bf16.msra.mxu0 0
    %1161 = vmatprep.subr.bf16.mxu0 0
    %1162 = vmatpush2.bf16.msra.mxu0 0
    %1163 = vmatprep.subr.bf16.mxu0 0
    %1164 = vmatpush2.bf16.msra.mxu0 0
    %1165 = vmatprep.subr.bf16.mxu0 0
    %1166 = vmatpush2.bf16.msra.mxu0 0
    %1167 = vmatprep.subr.bf16.mxu0 0
    %1168 = vmatpush2.bf16.msra.mxu0 0
    %1169 = vmatprep.subr.bf16.mxu0 0
    %1170 = vmatpush2.bf16.msra.mxu0 0
    %1171 = vmatprep.subr.bf16.mxu0 0
    %1172 = vmatpush2.bf16.msra.mxu0 0
    %1173 = vmatprep.subr.bf16.mxu0 0
    %1174 = vmatpush2.bf16.msra.mxu0 0
    %1175 = vmatprep.mubr.bf16.mxu0 0
    %1176 = vmatmul.mubr.bf16.gmra.mxu0 %v1138
    %v1177 = vpop.f32.mrf.mxu0
    %v1178 = vadd.f32 0.0, %v1177
    %v1179 = vpop.f32.mrf.mxu0
    %v1180 = vpop.f32.mrf.mxu0
    %v1181 = vpop.f32.mrf.mxu0
    %1182 = vdwg.mxu0
    %v1183 = vpack.c.bf16 %v1178, %v1130
    %s1184 = scalar_lea.vmem %s4, 12
    %v1185 = vld [vmem:[%s1184] sm:$0xf]
    %v1187 = vsel %vm147, %v1183, 0
    %v1190 = vsel %vm274, %v1185, 0
    %1192 = vmatprep.subr.bf16.mxu0 0
    %1193 = vmatpush1.bf16.msra.mxu0 0
    %1194 = vmatprep.subr.bf16.mxu0 0
    %1195 = vmatpush1.bf16.msra.mxu0 0
    %1196 = vmatprep.subr.bf16.mxu0 0
    %1197 = vmatpush1.bf16.msra.mxu0 0
    %1198 = vmatprep.subr.bf16.mxu0 0
    %1199 = vmatpush1.bf16.msra.mxu0 0
    %1200 = vmatprep.subr.bf16.mxu0 0
    %1201 = vmatpush1.bf16.msra.mxu0 0
    %1202 = vmatprep.subr.bf16.mxu0 0
    %1203 = vmatpush1.bf16.msra.mxu0 0
    %1204 = vmatprep.subr.bf16.mxu0 0
    %1205 = vmatpush1.bf16.msra.mxu0 0
    %1206 = vmatprep.subr.bf16.mxu0 0
    %1207 = vmatpush1.bf16.msra.mxu0 %v1190
    %1208 = vmatprep.subr.bf16.mxu0 0
    %1209 = vmatpush2.bf16.msra.mxu0 0
    %1210 = vmatprep.subr.bf16.mxu0 0
    %1211 = vmatpush2.bf16.msra.mxu0 0
    %1212 = vmatprep.subr.bf16.mxu0 0
    %1213 = vmatpush2.bf16.msra.mxu0 0
    %1214 = vmatprep.subr.bf16.mxu0 0
    %1215 = vmatpush2.bf16.msra.mxu0 0
    %1216 = vmatprep.subr.bf16.mxu0 0
    %1217 = vmatpush2.bf16.msra.mxu0 0
    %1218 = vmatprep.subr.bf16.mxu0 0
    %1219 = vmatpush2.bf16.msra.mxu0 0
    %1220 = vmatprep.subr.bf16.mxu0 0
    %1221 = vmatpush2.bf16.msra.mxu0 0
    %1222 = vmatprep.subr.bf16.mxu0 0
    %1223 = vmatpush2.bf16.msra.mxu0 0
    %1224 = vmatprep.mubr.bf16.mxu0 0
    %1225 = vmatmul.mubr.bf16.gmra.mxu0 %v1187
    %v1226 = vpop.f32.mrf.mxu0
    %v1227 = vadd.f32 0.0, %v1226
    %v1228 = vpop.f32.mrf.mxu0
    %v1229 = vpop.f32.mrf.mxu0
    %v1230 = vadd.f32 0.0, %v1229
    %v1231 = vpop.f32.mrf.mxu0
    %1232 = vdwg.mxu0
    %v1233 = vadd.f32 %v959, %v1227
    %v1234 = vadd.f32 %v960, %v1230
    %v1235 = vlaneseq
    %v1236 = vshrl.u32 %v1235, 7
    %v1237 = vsub.s32 4, %v1236
    %v1238 = vrot.slane %v33, %v1237
    %v1239 = vadd.f32 %v1233, %v1238
    %v1240 = vadd.f32 %v1234, %v1238
    %v1241 = vadd.f32 %v31, %v1239
    %v1242 = vadd.f32 %v32, %v1240
    %v1243 = vsel %vm34, %v1241, 0.0
    %1244 = vadd.xlane.f32.xlu0 %v1243
    %v1245 = vpop.xlane.xlu0 %1244
    %v1246 = vsel %vm34, %v1242, 0.0
    %1247 = vadd.xlane.f32.xlu0 %v1246
    %v1248 = vpop.xlane.xlu0 %1247
    %v1249 = vmul.f32 %v1245, %v41
    %v1250 = vmul.f32 %v1248, %v41
    %v1251 = vsub.f32 %v1241, %v1249
    %v1252 = vsub.f32 %v1242, %v1250
    %v1253 = vmul.f32 %v1251, %v1251
    %v1254 = vmul.f32 %v1252, %v1252
    %v1255 = vsel %vm34, %v1253, 0.0
    %1256 = vadd.xlane.f32.xlu0 %v1255
    %v1257 = vpop.xlane.xlu0 %1256
    %v1258 = vsel %vm34, %v1254, 0.0
    %1259 = vadd.xlane.f32.xlu0 %v1258
    %v1260 = vpop.xlane.xlu0 %1259
    %v1261 = vmul.f32 %v1257, %v41
    %v1262 = vmul.f32 %v1260, %v41
    %v1263 = vadd.f32 %v1261, 1e-05
    %v1264 = vadd.f32 %v1262, 1e-05
    %v1265 = vrsqrt.pop %v1263
    %v1266 = vrsqrt.pop %v1264
    %v1267 = vmul.f32 %v1251, %v1265
    %v1268 = vmul.f32 %v1252, %v1266
    %v1269 = vlaneseq
    %v1270 = vshrl.u32 %v1269, 7
    %v1271 = vsub.s32 2, %v1270
    %v1272 = vrot.slane %v33, %v1271
    %v1273 = vmul.f32 %v1267, %v1272
    %v1274 = vmul.f32 %v1268, %v1272
    %v1275 = vlaneseq
    %v1276 = vshrl.u32 %v1275, 7
    %v1277 = vsub.s32 3, %v1276
    %v1278 = vrot.slane %v33, %v1277
    %v1279 = vadd.f32 %v1273, %v1278
    %v1280 = vadd.f32 %v1274, %v1278
    %v1281 = vpack.c.bf16 %v1280, %v1279
    %v1282 = vld [vmem:[%s5] sm:$0xf]
    %v1283 = vld [vmem:[%s5 + $0x4] sm:$0xf]
    %v1284 = vld [vmem:[%s5 + $0x8] sm:$0xf]
    %v1285 = vld [vmem:[%s5 + $0xc] sm:$0xf]
    %v1286 = vld [vmem:[%s6] sm:$0x1]
    %v1288 = vlaneseq
    %v1289 = vshrl.u32 %v1288, 7
    %v1290 = vsub.s32 0, %v1289
    %v1291 = vrot.slane %v1286, %v1290
    %v1297 = vunpack.c.l.b16 %v1282
    %v1298 = vunpack.c.l.b16 %v1283
    %v1299 = vunpack.c.l.b16 %v1284
    %v1300 = vunpack.c.l.b16 %v1285
    %v1301 = vpack.c.b16 %v1298, %v1297
    %v1302 = vpack.c.b16 %v1300, %v1299
    %v1306 = vsel %vm34, %v1281, 0
    %1308 = vmatprep.subr.bf16.mxu0 0
    %1309 = vmatpush1.bf16.msra.mxu0 0
    %1310 = vmatprep.subr.bf16.mxu0 0
    %1311 = vmatpush1.bf16.msra.mxu0 0
    %1312 = vmatprep.subr.bf16.mxu0 0
    %1313 = vmatpush1.bf16.msra.mxu0 0
    %1314 = vmatprep.subr.bf16.mxu0 0
    %1315 = vmatpush1.bf16.msra.mxu0 0
    %1316 = vmatprep.subr.bf16.mxu0 0
    %1317 = vmatpush1.bf16.msra.mxu0 0
    %1318 = vmatprep.subr.bf16.mxu0 0
    %1319 = vmatpush1.bf16.msra.mxu0 0
    %1320 = vmatprep.subr.bf16.mxu0 0
    %1321 = vmatpush1.bf16.msra.mxu0 %v1302
    %1322 = vmatprep.subr.bf16.mxu0 0
    %1323 = vmatpush1.bf16.msra.mxu0 %v1301
    %1324 = vmatprep.subr.bf16.mxu0 0
    %1325 = vmatpush2.bf16.msra.mxu0 0
    %1326 = vmatprep.subr.bf16.mxu0 0
    %1327 = vmatpush2.bf16.msra.mxu0 0
    %1328 = vmatprep.subr.bf16.mxu0 0
    %1329 = vmatpush2.bf16.msra.mxu0 0
    %1330 = vmatprep.subr.bf16.mxu0 0
    %1331 = vmatpush2.bf16.msra.mxu0 0
    %1332 = vmatprep.subr.bf16.mxu0 0
    %1333 = vmatpush2.bf16.msra.mxu0 0
    %1334 = vmatprep.subr.bf16.mxu0 0
    %1335 = vmatpush2.bf16.msra.mxu0 0
    %1336 = vmatprep.subr.bf16.mxu0 0
    %1337 = vmatpush2.bf16.msra.mxu0 0
    %1338 = vmatprep.subr.bf16.mxu0 0
    %1339 = vmatpush2.bf16.msra.mxu0 0
    %1340 = vmatprep.mubr.bf16.mxu0 0
    %1341 = vmatmul.mubr.bf16.gmra.mxu0 %v1306
    %v1342 = vpop.f32.mrf.mxu0
    %v1343 = vadd.f32 %v1291, %v1342
    %v1344 = vpop.f32.mrf.mxu0
    %v1345 = vpop.f32.mrf.mxu0
    %v1346 = vadd.f32 %v1291, %v1345
    %v1347 = vpop.f32.mrf.mxu0
    %1348 = vdwg.mxu0
    %v1349 = vmax.f32 %v1343, 0.0
    %v1350 = vmax.f32 %v1346, 0.0
    %v1351 = vpack.c.bf16 %v1350, %v1349
    %v1352 = vld [vmem:[%s7] sm:$0xf]
    %v1353 = vld [vmem:[%s7 + $0x4] sm:$0xf]
    %v1354 = vld [vmem:[%s7 + $0x8] sm:$0xf]
    %v1355 = vld [vmem:[%s7 + $0xc] sm:$0xf]
    %v1356 = vld [vmem:[%s7 + $0x10] sm:$0xf]
    %v1357 = vld [vmem:[%s7 + $0x14] sm:$0xf]
    %v1358 = vld [vmem:[%s7 + $0x18] sm:$0xf]
    %v1359 = vld [vmem:[%s7 + $0x1c] sm:$0xf]
    %v1360 = vld [vmem:[%s7 + $0x20] sm:$0xf]
    %v1361 = vld [vmem:[%s7 + $0x24] sm:$0xf]
    %v1362 = vld [vmem:[%s7 + $0x28] sm:$0xf]
    %v1363 = vld [vmem:[%s7 + $0x2c] sm:$0xf]
    %v1364 = vld [vmem:[%s7 + $0x30] sm:$0xf]
    %v1365 = vld [vmem:[%s7 + $0x34] sm:$0xf]
    %v1366 = vld [vmem:[%s7 + $0x38] sm:$0xf]
    %v1367 = vld [vmem:[%s7 + $0x3c] sm:$0xf]
    %v1368 = vlaneseq
    %v1369 = vshrl.u32 %v1368, 7
    %v1370 = vsub.s32 5, %v1369
    %v1371 = vrot.slane %v33, %v1370
    %v1388 = vunpack.c.l.b16 %v1352
    %v1389 = vunpack.c.l.b16 %v1353
    %v1390 = vunpack.c.l.b16 %v1354
    %v1391 = vunpack.c.l.b16 %v1355
    %v1392 = vunpack.c.l.b16 %v1356
    %v1393 = vunpack.c.l.b16 %v1357
    %v1394 = vunpack.c.l.b16 %v1358
    %v1395 = vunpack.c.l.b16 %v1359
    %v1396 = vunpack.c.l.b16 %v1360
    %v1397 = vunpack.c.l.b16 %v1361
    %v1398 = vunpack.c.l.b16 %v1362
    %v1399 = vunpack.c.l.b16 %v1363
    %v1400 = vunpack.c.l.b16 %v1364
    %v1401 = vunpack.c.l.b16 %v1365
    %v1402 = vunpack.c.l.b16 %v1366
    %v1403 = vunpack.c.l.b16 %v1367
    %v1404 = vpack.c.b16 %v1389, %v1388
    %v1405 = vpack.c.b16 %v1391, %v1390
    %v1406 = vpack.c.b16 %v1393, %v1392
    %v1407 = vpack.c.b16 %v1395, %v1394
    %v1408 = vpack.c.b16 %v1397, %v1396
    %v1409 = vpack.c.b16 %v1399, %v1398
    %v1410 = vpack.c.b16 %v1401, %v1400
    %v1411 = vpack.c.b16 %v1403, %v1402
    %1420 = vmatprep.subr.bf16.mxu0 0
    %1421 = vmatpush1.bf16.msra.mxu0 %v1411
    %1422 = vmatprep.subr.bf16.mxu0 0
    %1423 = vmatpush1.bf16.msra.mxu0 %v1410
    %1424 = vmatprep.subr.bf16.mxu0 0
    %1425 = vmatpush1.bf16.msra.mxu0 %v1409
    %1426 = vmatprep.subr.bf16.mxu0 0
    %1427 = vmatpush1.bf16.msra.mxu0 %v1408
    %1428 = vmatprep.subr.bf16.mxu0 0
    %1429 = vmatpush1.bf16.msra.mxu0 %v1407
    %1430 = vmatprep.subr.bf16.mxu0 0
    %1431 = vmatpush1.bf16.msra.mxu0 %v1406
    %1432 = vmatprep.subr.bf16.mxu0 0
    %1433 = vmatpush1.bf16.msra.mxu0 %v1405
    %1434 = vmatprep.subr.bf16.mxu0 0
    %1435 = vmatpush1.bf16.msra.mxu0 %v1404
    %1436 = vmatprep.subr.bf16.mxu0 0
    %1437 = vmatpush2.bf16.msra.mxu0 0
    %1438 = vmatprep.subr.bf16.mxu0 0
    %1439 = vmatpush2.bf16.msra.mxu0 0
    %1440 = vmatprep.subr.bf16.mxu0 0
    %1441 = vmatpush2.bf16.msra.mxu0 0
    %1442 = vmatprep.subr.bf16.mxu0 0
    %1443 = vmatpush2.bf16.msra.mxu0 0
    %1444 = vmatprep.subr.bf16.mxu0 0
    %1445 = vmatpush2.bf16.msra.mxu0 0
    %1446 = vmatprep.subr.bf16.mxu0 0
    %1447 = vmatpush2.bf16.msra.mxu0 0
    %1448 = vmatprep.subr.bf16.mxu0 0
    %1449 = vmatpush2.bf16.msra.mxu0 0
    %1450 = vmatprep.subr.bf16.mxu0 0
    %1451 = vmatpush2.bf16.msra.mxu0 0
    %1452 = vmatprep.mubr.bf16.mxu0 0
    %1453 = vmatmul.mubr.bf16.gmra.mxu0 %v1351
    %v1454 = vpop.f32.mrf.mxu0
    %v1455 = vadd.f32 %v1371, %v1454
    %v1456 = vpop.f32.mrf.mxu0
    %v1457 = vpop.f32.mrf.mxu0
    %v1458 = vadd.f32 %v1371, %v1457
    %v1459 = vpop.f32.mrf.mxu0
    %1460 = vdwg.mxu0
    %v1461 = vadd.f32 %v1241, %v1455
    %v1462 = vadd.f32 %v1242, %v1458
    %1463 = vst.msk [vmem:[#allocation2] sm:$0xff] %vm34, %v1461
    %1464 = vst.msk [vmem:[#allocation2 + $0x8] sm:$0xff] %vm34, %v1462
    // Predicated region
    $region34: #{transformer_block.1} parent=1 // pred_check
      _
    $region35: #{transformer_block.1} parent=1 // pred_check_branch
      %1466 = sbr.rel (0) target = $region37
    $region36: #{transformer_block.1} parent=1 // pred_region
      %s1468 = ssub.s32 256, 256
      %1469 = vsyncadd [#allocation3], %s1468
      %s1470 = sshll.u32 [#allocation2], 4
      %s1471 = int_to_ptr.vmem [resolvable:$true] %s1470
      %1476 = dma.vmem_to_hbm [thread:$0]  %s1471, 256, %s8, [#allocation3], 128, 128, 8
    $region37: #{transformer_block.1} parent=1 // pred_fallthru
      _
    // Predicated region
    $region38: #{transformer_block.1} parent=1 // pred_check
      _
    $region39: #{transformer_block.1} parent=1 // pred_check_branch
      %1478 = sbr.rel (0) target = $region41
    $region40: #{transformer_block.1} parent=1 // pred_region
      %1479 = dma.done [#allocation3], 256
    $region41: #{transformer_block.1} parent=1 // pred_fallthru
      _
    %1480 = vsyncpa [#allocation3], 1

</llo_original>
